<compile_context>
chip_gen: v7x
topology: tpu7x:2x2x1
jax: 0.10.0
libtpu: 0.0.40
codegen_flags: <defaults>
</compile_context>

<pallas_src>
import functools

import jax
import jax.numpy as jnp
from jax import lax
from jax.experimental import pallas as pl
from jax.experimental.pallas import tpu as pltpu


def focal_loss_reg_kernel(anc_geo_ref, anc_tgt_ref, reg_ref, ann_iou_ref,
                          ann_gat_ref, out_ref, *, sub, nc):
    # anc_geo_ref: (8, TN), anc_tgt_ref: (8, TN), reg_ref: (1, 4, TN)
    # ann_iou_ref: (1, Mp, 8), ann_gat_ref: (1, 8, Mp), out_ref: (1, 1, 8, SUB)
    @pl.when(pl.program_id(2) == 0)
    def _():
        out_ref[...] = jnp.zeros_like(out_ref)

    # Per-image annotation quantities (hoisted: invariant over anchor tiles).
    ann = ann_iou_ref[0]                      # (Mp, 8)
    bx1 = ann[:, 0:1]
    by1 = ann[:, 1:2]
    bx2 = ann[:, 2:3]
    by2 = ann[:, 3:4]
    b_area = ann[:, 4:5]
    gmat = ann_gat_ref[0]                     # (8, Mp)
    m_p = ann.shape[0]

    def chunk(c, carry):
        loss_acc, pos_acc = carry
        off = c * sub
        if not isinstance(off, int):
            off = pl.multiple_of(off, 128)

        geo = anc_geo_ref[:, pl.ds(off, sub)]        # (8, sub)
        tgt = anc_tgt_ref[:, pl.ds(off, sub)]        # (8, sub)
        reg = reg_ref[:, :, pl.ds(off, sub)][0]      # (4, sub)

        ay1 = geo[0:1, :]
        ax1 = geo[1:2, :]
        ay2 = geo[2:3, :]
        ax2 = geo[3:4, :]
        a_area = geo[4:5, :]
        anc_sub = tgt[0:4, :]                        # [ctr_y, ctr_x, 0, 0]
        anc_mul = tgt[4:8, :]                        # [1/h, 1/w, 1/h, 1/w]

        # IoU: annotations on sublanes, anchors of this chunk on lanes.
        iw = jnp.maximum(jnp.minimum(ax2, bx2) - jnp.maximum(ax1, bx1), 0.0)
        ih = jnp.maximum(jnp.minimum(ay2, by2) - jnp.maximum(ay1, by1), 0.0)
        inter = iw * ih
        ua = jnp.maximum(a_area + b_area - inter, 1e-8)
        # Divide moved to the EUP: approx reciprocal + one Newton refinement.
        r = pl.reciprocal(ua, approx=True)
        r = r * (2.0 - ua * r)
        iou = inter * r                              # (Mp, sub)

        iou_max = jnp.max(iou, axis=0, keepdims=True)             # (1, sub)
        m_ids = lax.broadcasted_iota(jnp.int32, iou.shape, 0)
        cand = jnp.where(iou == iou_max, m_ids, m_p)
        iou_argmax = jnp.min(cand, axis=0, keepdims=True)         # first-index tie break
        positive = iou_max >= 0.5                                 # (1, sub)

        # Assigned-annotation [cy, cx, h, w] gather on the (idle) MXU.
        onehot = (m_ids == iou_argmax).astype(jnp.float32)        # (Mp, sub)
        g = jnp.dot(gmat, onehot, precision=lax.Precision.HIGHEST,
                    preferred_element_type=jnp.float32)           # (8, sub)
        g4 = g[0:4, :]                                            # [gcy, gcx, gh, gw]

        lin = (g4 - anc_sub) * anc_mul        # rows: [dy, dx, gh/ah, gw/aw]
        row = lax.broadcasted_iota(jnp.int32, lin.shape, 0)
        is_log = row >= 2
        safe = jnp.where(is_log, jnp.maximum(lin, 1e-20), 1.0)
        targets = jnp.where(is_log, jnp.log(safe), lin)           # [dy, dx, dh, dw]

        # Sublane-dense smooth-L1 on the full (4, sub) tile.
        diff = jnp.abs(targets - reg)
        sl1 = jnp.where(diff <= 1.0 / 9.0,
                        0.5 * 9.0 * diff * diff, diff - 0.5 / 9.0)
        loss_acc = loss_acc + jnp.where(positive, sl1, 0.0)
        pos_acc = pos_acc + positive.astype(jnp.float32)
        return loss_acc, pos_acc

    init = (jnp.zeros((4, sub), jnp.float32), jnp.zeros((1, sub), jnp.float32))
    if nc == 1:
        loss_acc, pos_acc = chunk(0, init)
    else:
        loss_acc, pos_acc = lax.fori_loop(0, nc, chunk, init, unroll=True)

    out_ref[0, 0, 0:4, :] += loss_acc
    out_ref[0, 0, 4:5, :] += pos_acc


def _round_up(x, m):
    return (x + m - 1) // m * m


@functools.partial(jax.jit, static_argnames=("tile_n", "sub_n", "n_split"))
def focal_loss_reg(regressions, anchors, annotations, *, tile_n=4096,
                   sub_n=None, n_split=None):
    """regressions: (B, N, 4); anchors: (1, N, 4); annotations: (B, M, 4)."""
    B, N, _ = regressions.shape
    M = annotations.shape[1]

    # --- annotations: pad M to >= 8 sublanes with far-away degenerate boxes ---
    # TODO(synk): the PyTorch path filters class_id == -1 rows and early-returns
    # on images with zero annotations; with fixed padded M the caller must use
    # this far-away (-1e6) padding convention (IoU 0 -> never positive).
    m_pad = max(_round_up(max(M, 1), 8), 8)
    ann = annotations.astype(jnp.float32)
    if m_pad != M:
        ann = jnp.concatenate(
            [ann, jnp.full((B, m_pad - M, 4), -1e6, jnp.float32)], axis=1)
    bx1 = ann[..., 0]
    by1 = ann[..., 1]
    bx2 = ann[..., 2]
    by2 = ann[..., 3]
    bw = bx2 - bx1
    bh = by2 - by1
    bcx = bx1 + 0.5 * bw
    bcy = by1 + 0.5 * bh
    bw_c = jnp.maximum(bw, 1.0)
    bh_c = jnp.maximum(bh, 1.0)
    b_area = bw * bh
    bz = jnp.zeros_like(bx1)
    ann_iou = jnp.stack([bx1, by1, bx2, by2, b_area, bz, bz, bz], axis=-1)
    ann_gat = jnp.stack([bcy, bcx, bh_c, bw_c, bz, bz, bz, bz], axis=1)

    # --- anchor-axis tiling: DMA tile TN, in-kernel strip-mine chunk SUB ---
    if sub_n is None:
        sub_n = max(128, min(512, (4096 // m_pad) // 128 * 128))
    tn = min(tile_n, _round_up(N, sub_n))
    tn = max(sub_n, tn // sub_n * sub_n)
    n_pad = _round_up(N, tn)
    n_tiles = n_pad // tn
    if n_split is None:
        n_split = 2 if (B == 1 and n_tiles >= 2) else 1
    if n_tiles % n_split != 0:
        n_pad = _round_up(n_pad, tn * n_split)
        n_tiles = n_pad // tn
    tps = n_tiles // n_split
    nc = tn // sub_n

    # --- anchors / regressions: pad N with far-away unit anchors ---
    anc = anchors[0].astype(jnp.float32)                        # (N, 4)
    reg = regressions.astype(jnp.float32)                       # (B, N, 4)
    if n_pad != N:
        pad_anchor = jnp.broadcast_to(
            jnp.array([-1e6, -1e6, -1e6 + 1.0, -1e6 + 1.0], jnp.float32),
            (n_pad - N, 4))
        anc = jnp.concatenate([anc, pad_anchor], axis=0)
        reg = jnp.concatenate(
            [reg, jnp.zeros((B, n_pad - N, 4), jnp.float32)], axis=1)

    ay1 = anc[:, 0]
    ax1 = anc[:, 1]
    ay2 = anc[:, 2]
    ax2 = anc[:, 3]
    aw = ax2 - ax1
    ah = ay2 - ay1
    actr_x = ax1 + 0.5 * aw
    actr_y = ay1 + 0.5 * ah
    inv_aw = 1.0 / aw
    inv_ah = 1.0 / ah
    az = jnp.zeros_like(ay1)
    anc_geo = jnp.stack([ay1, ax1, ay2, ax2, aw * ah, az, az, az], axis=0)
    anc_tgt = jnp.stack(
        [actr_y, actr_x, az, az, inv_ah, inv_aw, inv_ah, inv_aw], axis=0)

    # TODO(synk): emit regressions channel-major ((B, 4, N)) in the detection
    # head so this transpose's extra HBM pass disappears (the pads fuse into it).
    reg_t = jnp.transpose(reg, (0, 2, 1))                       # (B, 4, n_pad)

    kernel = functools.partial(focal_loss_reg_kernel, sub=sub_n, nc=nc)
    psums = pl.pallas_call(
        kernel,
        out_shape=jax.ShapeDtypeStruct((B, n_split, 8, sub_n), jnp.float32),
        grid_spec=pltpu.PrefetchScalarGridSpec(
            num_scalar_prefetch=0,
            grid=(B, n_split, tps),
            in_specs=[
                pl.BlockSpec((8, tn), lambda b, s, n: (0, s * tps + n)),
                pl.BlockSpec((8, tn), lambda b, s, n: (0, s * tps + n)),
                pl.BlockSpec((1, 4, tn), lambda b, s, n: (b, 0, s * tps + n)),
                pl.BlockSpec((1, m_pad, 8), lambda b, s, n: (b, 0, 0)),
                pl.BlockSpec((1, 8, m_pad), lambda b, s, n: (b, 0, 0)),
            ],
            out_specs=pl.BlockSpec((1, 1, 8, sub_n),
                                   lambda b, s, n: (b, s, 0, 0)),
        ),
        compiler_params=pltpu.CompilerParams(
            dimension_semantics=("parallel", "parallel", "arbitrary")),
    )(anc_geo, anc_tgt, reg_t, ann_iou, ann_gat)

    loss_sum = jnp.sum(psums[:, :, 0:4, :], axis=(1, 2, 3))     # (B,)
    n_pos = jnp.sum(psums[:, :, 4, :], axis=(1, 2))             # (B,)
    losses = jnp.where(n_pos > 0.0,
                       loss_sum / jnp.maximum(4.0 * n_pos, 1.0),
                       0.0)
    return jnp.mean(losses, keepdims=True) * 50.0               # shape (1,)


def focal_loss_reg_ref(regressions, anchors, annotations):
    """Pure-JAX reference (faithful port of the PyTorch module) for validation."""
    anchor = anchors[0]                                # (N, 4) y1,x1,y2,x2
    aw = anchor[:, 3] - anchor[:, 1]
    ah = anchor[:, 2] - anchor[:, 0]
    actr_x = anchor[:, 1] + 0.5 * aw
    actr_y = anchor[:, 0] + 0.5 * ah

    def per_image(reg, ann):
        a, b = anchor, ann
        area = (b[:, 2] - b[:, 0]) * (b[:, 3] - b[:, 1])
        iw = jnp.minimum(a[:, 3:4], b[:, 2]) - jnp.maximum(a[:, 1:2], b[:, 0])
        ih = jnp.minimum(a[:, 2:3], b[:, 3]) - jnp.maximum(a[:, 0:1], b[:, 1])
        iw = jnp.maximum(iw, 0.0)
        ih = jnp.maximum(ih, 0.0)
        ua = jnp.maximum(((a[:, 2] - a[:, 0]) * (a[:, 3] - a[:, 1]))[:, None]
                         + area - iw * ih, 1e-8)
        iou = iw * ih / ua                             # (N, M)
        iou_max = jnp.max(iou, axis=1)
        iou_arg = jnp.argmax(iou, axis=1)
        positive = iou_max >= 0.5
        assigned = ann[iou_arg]
        gw = assigned[:, 2] - assigned[:, 0]
        gh = assigned[:, 3] - assigned[:, 1]
        gcx = assigned[:, 0] + 0.5 * gw
        gcy = assigned[:, 1] + 0.5 * gh
        gw = jnp.maximum(gw, 1.0)
        gh = jnp.maximum(gh, 1.0)
        t = jnp.stack([(gcy - actr_y) / ah, (gcx - actr_x) / aw,
                       jnp.log(gh / ah), jnp.log(gw / aw)], axis=1)
        diff = jnp.abs(t - reg)
        el = jnp.where(diff <= 1.0 / 9.0, 0.5 * 9.0 * diff ** 2, diff - 0.5 / 9.0)
        el = jnp.where(positive[:, None], el, 0.0)
        n_pos = jnp.sum(positive.astype(jnp.float32))
        return jnp.where(n_pos > 0.0,
                         jnp.sum(el) / jnp.maximum(4.0 * n_pos, 1.0), 0.0)

    losses = jax.vmap(per_image)(regressions, annotations)
    return jnp.mean(losses, keepdims=True) * 50.0


if __name__ == "__main__":
    key = jax.random.PRNGKey(0)
    B, N, M = 2, 250, 7          # N not a lane multiple, M not a sublane multiple
    k1, k2, k3, k4, k5, k6 = jax.random.split(key, 6)

    # anchors: (1, N, 4) with (y1, x1, y2, x2)
    ay1 = jax.random.uniform(k1, (N,), minval=0.0, maxval=100.0)
    ax1 = jax.random.uniform(k2, (N,), minval=0.0, maxval=100.0)
    ah = jax.random.uniform(k3, (N,), minval=10.0, maxval=40.0)
    awd = jax.random.uniform(k4, (N,), minval=10.0, maxval=40.0)
    anchor_boxes = jnp.stack([ay1, ax1, ay1 + ah, ax1 + awd], axis=1)   # (N, 4)

    # annotations: (B, M, 4) with (x1, y1, x2, y2)
    xy = jax.random.uniform(k5, (B, M, 2), minval=0.0, maxval=100.0)
    wh = jax.random.uniform(k6, (B, M, 2), minval=20.0, maxval=60.0)
    annotations = jnp.concatenate([xy, xy + wh], axis=-1)               # (B, M, 4)

    # Guarantee some positive anchors: make the first 2*M anchors coincide with
    # the ground-truth boxes (converted x1,y1,x2,y2 -> y1,x1,y2,x2).
    gt_as_anchor = annotations[:, :, jnp.array([1, 0, 3, 2])].reshape(B * M, 4)
    anchor_boxes = anchor_boxes.at[: B * M].set(gt_as_anchor)
    anchors = anchor_boxes[None]                                        # (1, N, 4)

    # regressions: (B, N, 4) with (dy, dx, dh, dw)
    regressions = 0.1 * jax.random.normal(jax.random.PRNGKey(42), (B, N, 4))

    ref = focal_loss_reg_ref(regressions.astype(jnp.float32),
                             anchors.astype(jnp.float32),
                             annotations.astype(jnp.float32))

    outs = [
        # Default: one tile, one in-kernel chunk.
        focal_loss_reg(regressions, anchors, annotations),
        # Multi-tile accumulation + in-kernel strip-mining (nc = 2).
        focal_loss_reg(regressions, anchors, annotations, tile_n=256, sub_n=128),
        # Parallel shard split of the anchor-tile axis (grid = (B, 2, 2)).
        focal_loss_reg(regressions, anchors, annotations, tile_n=128, sub_n=128,
                       n_split=2),
    ]
    outs = [jax.block_until_ready(o) for o in outs]
    for out in outs:
        assert out.shape == (1,)
        assert jnp.all(jnp.isfinite(out))
        assert jnp.allclose(out, ref, rtol=1e-4, atol=1e-4), (out, ref)
    print("KERNEL_OK")
</pallas_src>

<mosaic_0001>
module attributes {stable_mosaic.version = 11 : i64} {
  func.func @focal_loss_reg_kernel(%arg0: i32, %arg1: i32, %arg2: i32, %arg3: memref<8x512xf32, #tpu.memory_space<vmem>>, %arg4: memref<8x512xf32, #tpu.memory_space<vmem>>, %arg5: memref<1x4x512xf32, #tpu.memory_space<vmem>>, %arg6: memref<1x8x8xf32, #tpu.memory_space<vmem>>, %arg7: memref<1x8x8xf32, #tpu.memory_space<vmem>>, %arg8: memref<1x1x8x512xf32, #tpu.memory_space<vmem>>) attributes {dimension_semantics = [#tpu.dimension_semantics<parallel>, #tpu.dimension_semantics<parallel>, #tpu.dimension_semantics<arbitrary>], iteration_bounds = array<i64: 2, 1, 1>, scalar_prefetch = 0 : i64, scratch_operands = 0 : i64, tpu.core_type = #tpu.core_type<tc>, window_params = [{transform_indices = @transform_0, window_bounds = array<i64: 8, 512>}, {transform_indices = @transform_1, window_bounds = array<i64: 8, 512>}, {transform_indices = @transform_2, window_bounds = array<i64: 1, 4, 512>}, {transform_indices = @transform_3, window_bounds = array<i64: 1, 8, 8>}, {transform_indices = @transform_4, window_bounds = array<i64: 1, 8, 8>}, {transform_indices = @transform_5, window_bounds = array<i64: 1, 1, 8, 512>}]} {
    %c0_i32 = arith.constant 0 : i32
    %0 = arith.cmpi eq, %arg2, %c0_i32 : i32
    %1 = arith.extui %0 : i1 to i32
    %c0_i32_0 = arith.constant 0 : i32
    %2 = arith.cmpi ne, %1, %c0_i32_0 : i32
    scf.if %2 {
      %cst_43 = arith.constant 0.000000e+00 : f32
      %114 = vector.broadcast %cst_43 : f32 to vector<1x1x8x512xf32>
      %c0_44 = arith.constant 0 : index
      %c0_45 = arith.constant 0 : index
      %c0_46 = arith.constant 0 : index
      %c0_47 = arith.constant 0 : index
      %115 = vector.load %arg8[%c0_44, %c0_45, %c0_46, %c0_47] : memref<1x1x8x512xf32, #tpu.memory_space<vmem>>, vector<1x1x8x512xf32>
      tpu.vector_store %arg8[%c0_44, %c0_45, %c0_46, %c0_47], %114 {strides = array<i32>} : memref<1x1x8x512xf32, #tpu.memory_space<vmem>>, vector<1x1x8x512xf32>,
    } else {
    }
    %c0 = arith.constant 0 : index
    %c0_1 = arith.constant 0 : index
    %c0_2 = arith.constant 0 : index
    %3 = vector.load %arg6[%c0, %c0_1, %c0_2] : memref<1x8x8xf32, #tpu.memory_space<vmem>>, vector<1x8x8xf32>
    %4 = vector.shape_cast %3 : vector<1x8x8xf32> to vector<8x8xf32>
    %5 = vector.extract_strided_slice %4 {offsets = [0, 0], sizes = [8, 1], strides = [1, 1]} : vector<8x8xf32> to vector<8x1xf32>
    %6 = vector.extract_strided_slice %4 {offsets = [0, 1], sizes = [8, 1], strides = [1, 1]} : vector<8x8xf32> to vector<8x1xf32>
    %7 = vector.extract_strided_slice %4 {offsets = [0, 2], sizes = [8, 1], strides = [1, 1]} : vector<8x8xf32> to vector<8x1xf32>
    %8 = vector.extract_strided_slice %4 {offsets = [0, 3], sizes = [8, 1], strides = [1, 1]} : vector<8x8xf32> to vector<8x1xf32>
    %9 = vector.extract_strided_slice %4 {offsets = [0, 4], sizes = [8, 1], strides = [1, 1]} : vector<8x8xf32> to vector<8x1xf32>
    %c0_3 = arith.constant 0 : index
    %c0_4 = arith.constant 0 : index
    %c0_5 = arith.constant 0 : index
    %10 = vector.load %arg7[%c0_3, %c0_4, %c0_5] : memref<1x8x8xf32, #tpu.memory_space<vmem>>, vector<1x8x8xf32>
    %11 = vector.shape_cast %10 : vector<1x8x8xf32> to vector<8x8xf32>
    %cst = arith.constant 0.000000e+00 : f32
    %12 = vector.broadcast %cst : f32 to vector<4x512xf32>
    %cst_6 = arith.constant 0.000000e+00 : f32
    %13 = vector.broadcast %cst_6 : f32 to vector<1x512xf32>
    %c0_7 = arith.constant 0 : index
    %c0_8 = arith.constant 0 : index
    %14 = vector.load %arg3[%c0_7, %c0_8] : memref<8x512xf32, #tpu.memory_space<vmem>>, vector<8x512xf32>
    %c0_9 = arith.constant 0 : index
    %c0_10 = arith.constant 0 : index
    %15 = vector.load %arg4[%c0_9, %c0_10] : memref<8x512xf32, #tpu.memory_space<vmem>>, vector<8x512xf32>
    %c0_11 = arith.constant 0 : index
    %c0_12 = arith.constant 0 : index
    %c0_13 = arith.constant 0 : index
    %16 = vector.load %arg5[%c0_11, %c0_12, %c0_13] : memref<1x4x512xf32, #tpu.memory_space<vmem>>, vector<1x4x512xf32>
    %17 = vector.shape_cast %16 : vector<1x4x512xf32> to vector<4x512xf32>
    %18 = vector.extract_strided_slice %14 {offsets = [0, 0], sizes = [1, 512], strides = [1, 1]} : vector<8x512xf32> to vector<1x512xf32>
    %19 = vector.extract_strided_slice %14 {offsets = [1, 0], sizes = [1, 512], strides = [1, 1]} : vector<8x512xf32> to vector<1x512xf32>
    %20 = vector.extract_strided_slice %14 {offsets = [2, 0], sizes = [1, 512], strides = [1, 1]} : vector<8x512xf32> to vector<1x512xf32>
    %21 = vector.extract_strided_slice %14 {offsets = [3, 0], sizes = [1, 512], strides = [1, 1]} : vector<8x512xf32> to vector<1x512xf32>
    %22 = vector.extract_strided_slice %14 {offsets = [4, 0], sizes = [1, 512], strides = [1, 1]} : vector<8x512xf32> to vector<1x512xf32>
    %23 = vector.extract_strided_slice %15 {offsets = [0, 0], sizes = [4, 512], strides = [1, 1]} : vector<8x512xf32> to vector<4x512xf32>
    %24 = vector.extract_strided_slice %15 {offsets = [4, 0], sizes = [4, 512], strides = [1, 1]} : vector<8x512xf32> to vector<4x512xf32>
    %25 = vector.broadcast %21 : vector<1x512xf32> to vector<8x512xf32>
    %26 = vector.broadcast %7 : vector<8x1xf32> to vector<8x512xf32>
    %27 = arith.minimumf %25, %26 : vector<8x512xf32>
    %28 = vector.broadcast %19 : vector<1x512xf32> to vector<8x512xf32>
    %29 = vector.broadcast %5 : vector<8x1xf32> to vector<8x512xf32>
    %30 = arith.maximumf %28, %29 : vector<8x512xf32>
    %31 = arith.subf %27, %30 : vector<8x512xf32>
    %cst_14 = arith.constant 0.000000e+00 : f32
    %32 = vector.broadcast %cst_14 : f32 to vector<8x512xf32>
    %33 = arith.maximumf %31, %32 : vector<8x512xf32>
    %34 = vector.broadcast %20 : vector<1x512xf32> to vector<8x512xf32>
    %35 = vector.broadcast %8 : vector<8x1xf32> to vector<8x512xf32>
    %36 = arith.minimumf %34, %35 : vector<8x512xf32>
    %37 = vector.broadcast %18 : vector<1x512xf32> to vector<8x512xf32>
    %38 = vector.broadcast %6 : vector<8x1xf32> to vector<8x512xf32>
    %39 = arith.maximumf %37, %38 : vector<8x512xf32>
    %40 = arith.subf %36, %39 : vector<8x512xf32>
    %cst_15 = arith.constant 0.000000e+00 : f32
    %41 = vector.broadcast %cst_15 : f32 to vector<8x512xf32>
    %42 = arith.maximumf %40, %41 : vector<8x512xf32>
    %43 = arith.mulf %33, %42 : vector<8x512xf32>
    %44 = vector.broadcast %22 : vector<1x512xf32> to vector<8x512xf32>
    %45 = vector.broadcast %9 : vector<8x1xf32> to vector<8x512xf32>
    %46 = arith.addf %44, %45 : vector<8x512xf32>
    %47 = arith.subf %46, %43 : vector<8x512xf32>
    %cst_16 = arith.constant 9.99999993E-9 : f32
    %48 = vector.broadcast %cst_16 : f32 to vector<8x512xf32>
    %49 = arith.maximumf %47, %48 : vector<8x512xf32>
    %50 = tpu.reciprocal %49 {approx = true} : vector<8x512xf32> -> vector<8x512xf32>
    %51 = arith.mulf %49, %50 : vector<8x512xf32>
    %cst_17 = arith.constant 2.000000e+00 : f32
    %52 = vector.broadcast %cst_17 : f32 to vector<8x512xf32>
    %53 = arith.subf %52, %51 : vector<8x512xf32>
    %54 = arith.mulf %50, %53 : vector<8x512xf32>
    %55 = arith.mulf %43, %54 : vector<8x512xf32>
    %cst_18 = arith.constant dense<0xFF800000> : vector<512xf32>
    %56 = vector.multi_reduction <maximumf>, %55, %cst_18 [0] : vector<8x512xf32> to vector<512xf32>
    %57 = vector.shape_cast %56 : vector<512xf32> to vector<1x512xf32>
    %58 = tpu.iota {dimensions = array<i32: 0>} : vector<8x512xi32>
    %59 = vector.broadcast %57 : vector<1x512xf32> to vector<8x512xf32>
    %60 = arith.cmpf oeq, %55, %59 : vector<8x512xf32>
    %c8_i32 = arith.constant 8 : i32
    %61 = vector.broadcast %c8_i32 : i32 to vector<8x512xi32>
    %62 = arith.select %60, %58, %61 : vector<8x512xi1>, vector<8x512xi32>
    %cst_19 = arith.constant dense<2147483647> : vector<512xi32>
    %63 = vector.multi_reduction <minsi>, %62, %cst_19 [0] : vector<8x512xi32> to vector<512xi32>
    %64 = vector.shape_cast %63 : vector<512xi32> to vector<1x512xi32>
    %cst_20 = arith.constant 5.000000e-01 : f32
    %65 = vector.broadcast %cst_20 : f32 to vector<1x512xf32>
    %66 = arith.cmpf oge, %57, %65 : vector<1x512xf32>
    %67 = vector.broadcast %64 : vector<1x512xi32> to vector<8x512xi32>
    %68 = arith.cmpi eq, %58, %67 : vector<8x512xi32>
    %69 = arith.extui %68 : vector<8x512xi1> to vector<8x512xi32>
    %70 = arith.sitofp %69 : vector<8x512xi32> to vector<8x512xf32>
    %cst_21 = arith.constant dense<0.000000e+00> : vector<8x512xf32>
    %71 = tpu.matmul %11, %70, %cst_21 {dimension_numbers = #tpu.dot_dimension_numbers<[1], [0], [0], [1], [0, 0, 1, 1], [], []>, precision = #tpu.contract_precision<fp32>} : vector<8x8xf32>, vector<8x512xf32>, vector<8x512xf32> -> vector<8x512xf32>
    %72 = vector.extract_strided_slice %71 {offsets = [0, 0], sizes = [4, 512], strides = [1, 1]} : vector<8x512xf32> to vector<4x512xf32>
    %73 = arith.subf %72, %23 : vector<4x512xf32>
    %74 = arith.mulf %73, %24 : vector<4x512xf32>
    %75 = tpu.iota {dimensions = array<i32: 0>} : vector<4x512xi32>
    %c2_i32 = arith.constant 2 : i32
    %76 = vector.broadcast %c2_i32 : i32 to vector<4x512xi32>
    %77 = arith.cmpi sge, %75, %76 : vector<4x512xi32>
    %cst_22 = arith.constant 9.99999968E-21 : f32
    %78 = vector.broadcast %cst_22 : f32 to vector<4x512xf32>
    %79 = arith.maximumf %74, %78 : vector<4x512xf32>
    %cst_23 = arith.constant 1.000000e+00 : f32
    %80 = vector.broadcast %cst_23 : f32 to vector<4x512xf32>
    %81 = arith.select %77, %79, %80 : vector<4x512xi1>, vector<4x512xf32>
    %82 = math.log %81 : vector<4x512xf32>
    %83 = arith.select %77, %82, %74 : vector<4x512xi1>, vector<4x512xf32>
    %84 = arith.subf %83, %17 : vector<4x512xf32>
    %85 = math.absf %84 : vector<4x512xf32>
    %cst_24 = arith.constant 0.111111112 : f32
    %86 = vector.broadcast %cst_24 : f32 to vector<4x512xf32>
    %87 = arith.cmpf ole, %85, %86 : vector<4x512xf32>
    %cst_25 = arith.constant 4.500000e+00 : f32
    %88 = vector.broadcast %cst_25 : f32 to vector<4x512xf32>
    %89 = arith.mulf %88, %85 : vector<4x512xf32>
    %90 = arith.mulf %89, %85 : vector<4x512xf32>
    %cst_26 = arith.constant 0.055555556 : f32
    %91 = vector.broadcast %cst_26 : f32 to vector<4x512xf32>
    %92 = arith.subf %85, %91 : vector<4x512xf32>
    %93 = arith.select %87, %90, %92 : vector<4x512xi1>, vector<4x512xf32>
    %cst_27 = arith.constant 0.000000e+00 : f32
    %94 = vector.shape_cast %66 : vector<1x512xi1> to vector<1x512xi1>
    %95 = vector.broadcast %94 : vector<1x512xi1> to vector<4x512xi1>
    %96 = vector.broadcast %cst_27 : f32 to vector<4x512xf32>
    %97 = arith.select %95, %93, %96 : vector<4x512xi1>, vector<4x512xf32>
    %98 = arith.addf %12, %97 : vector<4x512xf32>
    %99 = arith.extui %66 : vector<1x512xi1> to vector<1x512xi32>
    %100 = arith.sitofp %99 : vector<1x512xi32> to vector<1x512xf32>
    %101 = arith.addf %13, %100 : vector<1x512xf32>
    %c0_28 = arith.constant 0 : index
    %c0_29 = arith.constant 0 : index
    %c0_30 = arith.constant 0 : index
    %c0_31 = arith.constant 0 : index
    %102 = vector.load %arg8[%c0_28, %c0_29, %c0_30, %c0_31] : memref<1x1x8x512xf32, #tpu.memory_space<vmem>>, vector<1x1x4x512xf32>
    %103 = vector.shape_cast %102 : vector<1x1x4x512xf32> to vector<4x512xf32>
    %104 = arith.addf %103, %98 : vector<4x512xf32>
    %c0_32 = arith.constant 0 : index
    %c0_33 = arith.constant 0 : index
    %c0_34 = arith.constant 0 : index
    %c0_35 = arith.constant 0 : index
    %105 = vector.load %arg8[%c0_32, %c0_33, %c0_34, %c0_35] : memref<1x1x8x512xf32, #tpu.memory_space<vmem>>, vector<1x1x4x512xf32>
    %106 = vector.shape_cast %105 : vector<1x1x4x512xf32> to vector<4x512xf32>
    %107 = vector.shape_cast %104 : vector<4x512xf32> to vector<1x1x4x512xf32>
    tpu.vector_store %arg8[%c0_32, %c0_33, %c0_34, %c0_35], %107 {strides = array<i32>} : memref<1x1x8x512xf32, #tpu.memory_space<vmem>>, vector<1x1x4x512xf32>,
    %c0_36 = arith.constant 0 : index
    %c0_37 = arith.constant 0 : index
    %c4 = arith.constant 4 : index
    %c0_38 = arith.constant 0 : index
    %108 = vector.load %arg8[%c0_36, %c0_37, %c4, %c0_38] : memref<1x1x8x512xf32, #tpu.memory_space<vmem>>, vector<1x1x1x512xf32>
    %109 = vector.shape_cast %108 : vector<1x1x1x512xf32> to vector<1x512xf32>
    %110 = arith.addf %109, %101 : vector<1x512xf32>
    %c0_39 = arith.constant 0 : index
    %c0_40 = arith.constant 0 : index
    %c4_41 = arith.constant 4 : index
    %c0_42 = arith.constant 0 : index
    %111 = vector.load %arg8[%c0_39, %c0_40, %c4_41, %c0_42] : memref<1x1x8x512xf32, #tpu.memory_space<vmem>>, vector<1x1x1x512xf32>
    %112 = vector.shape_cast %111 : vector<1x1x1x512xf32> to vector<1x512xf32>
    %113 = vector.shape_cast %110 : vector<1x512xf32> to vector<1x1x1x512xf32>
    tpu.vector_store %arg8[%c0_39, %c0_40, %c4_41, %c0_42], %113 {strides = array<i32>} : memref<1x1x8x512xf32, #tpu.memory_space<vmem>>, vector<1x1x1x512xf32>,
    return
  }
  func.func @transform_0(%arg0: i32, %arg1: i32, %arg2: i32) -> (i32, i32) {
    %c1_i32 = arith.constant 1 : i32
    %0 = arith.muli %arg1, %c1_i32 : i32
    %1 = arith.addi %0, %arg2 : i32
    %c0_i32 = arith.constant 0 : i32
    %c0_i32_0 = arith.constant 0 : i32
    return %c0_i32, %1 : i32, i32
  }
  func.func @transform_1(%arg0: i32, %arg1: i32, %arg2: i32) -> (i32, i32) {
    %c1_i32 = arith.constant 1 : i32
    %0 = arith.muli %arg1, %c1_i32 : i32
    %1 = arith.addi %0, %arg2 : i32
    %c0_i32 = arith.constant 0 : i32
    %c0_i32_0 = arith.constant 0 : i32
    return %c0_i32, %1 : i32, i32
  }
  func.func @transform_2(%arg0: i32, %arg1: i32, %arg2: i32) -> (i32, i32, i32) {
    %c1_i32 = arith.constant 1 : i32
    %0 = arith.muli %arg1, %c1_i32 : i32
    %1 = arith.addi %0, %arg2 : i32
    %c0_i32 = arith.constant 0 : i32
    %c0_i32_0 = arith.constant 0 : i32
    return %arg0, %c0_i32, %1 : i32, i32, i32
  }
  func.func @transform_3(%arg0: i32, %arg1: i32, %arg2: i32) -> (i32, i32, i32) {
    %c0_i32 = arith.constant 0 : i32
    %c0_i32_0 = arith.constant 0 : i32
    %c0_i32_1 = arith.constant 0 : i32
    return %arg0, %c0_i32, %c0_i32_0 : i32, i32, i32
  }
  func.func @transform_4(%arg0: i32, %arg1: i32, %arg2: i32) -> (i32, i32, i32) {
    %c0_i32 = arith.constant 0 : i32
    %c0_i32_0 = arith.constant 0 : i32
    %c0_i32_1 = arith.constant 0 : i32
    return %arg0, %c0_i32, %c0_i32_0 : i32, i32, i32
  }
  func.func @transform_5(%arg0: i32, %arg1: i32, %arg2: i32) -> (i32, i32, i32, i32) {
    %c0_i32 = arith.constant 0 : i32
    %c0_i32_0 = arith.constant 0 : i32
    %c0_i32_1 = arith.constant 0 : i32
    return %arg0, %arg1, %c0_i32, %c0_i32_0 : i32, i32, i32, i32
  }
}

</mosaic_0001>

<llo_original>
// kernel: focal_loss_reg.1
$region0: #{focal_loss_reg.1}
  #allocation0 [shape = 'u32[]', space=smem, size = 0x4, offset = 0x4, fixed_abs, tag = 'smem constant byte address 0x4 - core index']
  #allocation1 [shape = 'u32[144,128]{1,0:T(1,128)}', space=vmem, size = 0x12000, scoped, tag = 'internal scratch']
  %s0 = inlined_call_operand.vmem [shape: f32[8,512], index: 0, kind: input, shape index: {}]
  %s1 = inlined_call_operand.vmem [shape: f32[8,512], index: 1, kind: input, shape index: {}]
  %s2 = inlined_call_operand.vmem [shape: f32[2,4,512], index: 2, kind: input, shape index: {}]
  %s3 = inlined_call_operand.vmem [shape: f32[2,8,8], index: 3, kind: input, shape index: {}]
  %s4 = inlined_call_operand.vmem [shape: f32[2,8,8], index: 4, kind: input, shape index: {}]
  %s5 = inlined_call_operand.vmem [shape: f32[2,1,8,512], index: 5, kind: output, shape index: {}]
  %s6 = sld [smem:[#allocation0]]
  $region57: #{focal_loss_reg.1} parent=0
    _
  %s8 = ssub.s32 1, %s6
  %s9 = scalar_select 0, %s8, %s6
  loop: start=0, step=1, limit=4
  $region2: #{focal_loss_reg.1} parent=0 // loop_pre_header
    _
  $region3: #{focal_loss_reg.1} parent=0 // loop_header
    %s11 = sphi 0, %s15
    %p12 = scmp.ge.s32.totalorder %s11, 4
    %s18 = sphi 0, %s37
    %s19 = sphi 0, %s33
    %s20 = sphi 0, %s29
    %s21 = sphi 0, %s18
    %s22 = sphi 0, %s19
    %s23 = sphi 0, %s20
    %s24 = sphi 0, %s21
    %s25 = sphi 0, %s22
    %s26 = sphi 0, %s23
    %s42 = sphi 0, %s44
    %s45 = sphi 0, %s42
    %s46 = sphi 0, %s45
    %s62 = sphi 0, %s46
    %s70 = sphi 0, %s72
    %s73 = sphi 0, %s70
    %s74 = sphi 0, %s73
    %s90 = sphi 0, %s74
    %s100 = sphi 0, %s102
    %s103 = sphi 0, %s100
    %s104 = sphi 0, %s103
    %s120 = sphi 0, %s104
    %s126 = sphi 0, %s128
    %s129 = sphi 0, %s126
    %s130 = sphi 0, %s129
    %s146 = sphi 0, %s130
    %s152 = sphi 0, %s154
    %s155 = sphi 0, %s152
    %s156 = sphi 0, %s155
    %s172 = sphi 0, %s156
    %s180 = sphi 0, %s182
    %s183 = sphi 0, %s180
    %s184 = sphi 0, %s183
    %s200 = sphi 0, %s184
  $region4: #{focal_loss_reg.1} parent=0 // loop_header_branch
    %14 = sbr.rel (%p12) target = $region8
  $region5: #{focal_loss_reg.1} parent=0 // loop_body
    %s16 = ssub.s32 %s11, 1
    %s17 = ssub.s32 %s11, 2
    %s27 = sadd.s32 1, %s20
    %p28 = scmp.ge.s32.totalorder %s27, 1
    %s29 = scalar_select %p28, 0, %s27
    %s30 = sadd.s32 1, %s19
    %s31 = scalar_select %p28, %s30, %s19
    %p32 = scmp.ge.s32.totalorder %s31, 1
    %s33 = scalar_select %p32, 0, %s31
    %s34 = sadd.s32 1, %s18
    %s35 = scalar_select %p32, %s34, %s18
    %p36 = scmp.ge.s32.totalorder %s35, 2
    %s37 = scalar_select %p36, 0, %s35
    %s38 = sadd.s32 %s19, %s20
    %s39 = sadd.s32 %s33, %s29
    %s40 = ssub.s32 %s38, %s39
    %p41 = scmp.eq.s32.totalorder %s40, 0
    %s43 = sadd.s32 %s42, 1
    %s44 = scalar_select %p41, %s42, %s43
    %p47 = pneg %p41
    %p48 = scmp.eq.s32.totalorder %s11, 1
    %p49 = por %p47, %p48
    %p50 = scmp.ne.s32.totalorder %s42, %s45
    %p51 = scmp.eq.s32.totalorder %s11, 0
    %p52 = por %p50, %p51
    %p53 = scmp.ne.s32.totalorder %s42, %s45
    %p54 = scmp.eq.s32.totalorder %s16, 1
    %p55 = por %p53, %p54
    %p56 = scmp.ne.s32.totalorder %s45, %s46
    %p57 = scmp.eq.s32.totalorder %s16, 0
    %p58 = por %p56, %p57
    %p59 = scmp.ne.s32.totalorder %s45, %s46
    %p60 = scmp.eq.s32.totalorder %s17, 1
    %p61 = por %p59, %p60
    %p63 = scmp.ne.s32.totalorder %s46, %s62
    %p64 = scmp.eq.s32.totalorder %s17, 0
    %p65 = por %p63, %p64
    %s66 = sadd.s32 %s19, %s20
    %s67 = sadd.s32 %s33, %s29
    %s68 = ssub.s32 %s66, %s67
    %p69 = scmp.eq.s32.totalorder %s68, 0
    %s71 = sadd.s32 %s70, 1
    %s72 = scalar_select %p69, %s70, %s71
    %p75 = pneg %p69
    %p76 = scmp.eq.s32.totalorder %s11, 1
    %p77 = por %p75, %p76
    %p78 = scmp.ne.s32.totalorder %s70, %s73
    %p79 = scmp.eq.s32.totalorder %s11, 0
    %p80 = por %p78, %p79
    %p81 = scmp.ne.s32.totalorder %s70, %s73
    %p82 = scmp.eq.s32.totalorder %s16, 1
    %p83 = por %p81, %p82
    %p84 = scmp.ne.s32.totalorder %s73, %s74
    %p85 = scmp.eq.s32.totalorder %s16, 0
    %p86 = por %p84, %p85
    %p87 = scmp.ne.s32.totalorder %s73, %s74
    %p88 = scmp.eq.s32.totalorder %s17, 1
    %p89 = por %p87, %p88
    %p91 = scmp.ne.s32.totalorder %s74, %s90
    %p92 = scmp.eq.s32.totalorder %s17, 0
    %p93 = por %p91, %p92
    %s94 = sadd.s32 %s19, %s20
    %s95 = sadd.s32 %s33, %s29
    %s96 = ssub.s32 %s18, %s37
    %s97 = ssub.s32 %s94, %s95
    %s98 = sor.u32 %s96, %s97
    %p99 = scmp.eq.s32.totalorder %s98, 0
    %s101 = sadd.s32 %s100, 1
    %s102 = scalar_select %p99, %s100, %s101
    %p105 = pneg %p99
    %p106 = scmp.eq.s32.totalorder %s11, 1
    %p107 = por %p105, %p106
    %p108 = scmp.ne.s32.totalorder %s100, %s103
    %p109 = scmp.eq.s32.totalorder %s11, 0
    %p110 = por %p108, %p109
    %p111 = scmp.ne.s32.totalorder %s100, %s103
    %p112 = scmp.eq.s32.totalorder %s16, 1
    %p113 = por %p111, %p112
    %p114 = scmp.ne.s32.totalorder %s103, %s104
    %p115 = scmp.eq.s32.totalorder %s16, 0
    %p116 = por %p114, %p115
    %p117 = scmp.ne.s32.totalorder %s103, %s104
    %p118 = scmp.eq.s32.totalorder %s17, 1
    %p119 = por %p117, %p118
    %p121 = scmp.ne.s32.totalorder %s104, %s120
    %p122 = scmp.eq.s32.totalorder %s17, 0
    %p123 = por %p121, %p122
    %s124 = ssub.s32 %s18, %s37
    %p125 = scmp.eq.s32.totalorder %s124, 0
    %s127 = sadd.s32 %s126, 1
    %s128 = scalar_select %p125, %s126, %s127
    %p131 = pneg %p125
    %p132 = scmp.eq.s32.totalorder %s11, 1
    %p133 = por %p131, %p132
    %p134 = scmp.ne.s32.totalorder %s126, %s129
    %p135 = scmp.eq.s32.totalorder %s11, 0
    %p136 = por %p134, %p135
    %p137 = scmp.ne.s32.totalorder %s126, %s129
    %p138 = scmp.eq.s32.totalorder %s16, 1
    %p139 = por %p137, %p138
    %p140 = scmp.ne.s32.totalorder %s129, %s130
    %p141 = scmp.eq.s32.totalorder %s16, 0
    %p142 = por %p140, %p141
    %p143 = scmp.ne.s32.totalorder %s129, %s130
    %p144 = scmp.eq.s32.totalorder %s17, 1
    %p145 = por %p143, %p144
    %p147 = scmp.ne.s32.totalorder %s130, %s146
    %p148 = scmp.eq.s32.totalorder %s17, 0
    %p149 = por %p147, %p148
    %s150 = ssub.s32 %s18, %s37
    %p151 = scmp.eq.s32.totalorder %s150, 0
    %s153 = sadd.s32 %s152, 1
    %s154 = scalar_select %p151, %s152, %s153
    %p157 = pneg %p151
    %p158 = scmp.eq.s32.totalorder %s11, 1
    %p159 = por %p157, %p158
    %p160 = scmp.ne.s32.totalorder %s152, %s155
    %p161 = scmp.eq.s32.totalorder %s11, 0
    %p162 = por %p160, %p161
    %p163 = scmp.ne.s32.totalorder %s152, %s155
    %p164 = scmp.eq.s32.totalorder %s16, 1
    %p165 = por %p163, %p164
    %p166 = scmp.ne.s32.totalorder %s155, %s156
    %p167 = scmp.eq.s32.totalorder %s16, 0
    %p168 = por %p166, %p167
    %p169 = scmp.ne.s32.totalorder %s155, %s156
    %p170 = scmp.eq.s32.totalorder %s17, 1
    %p171 = por %p169, %p170
    %p173 = scmp.ne.s32.totalorder %s156, %s172
    %p174 = scmp.eq.s32.totalorder %s17, 0
    %p175 = por %p173, %p174
    %s176 = ssub.s32 %s18, %s37
    %s177 = ssub.s32 %s19, %s33
    %s178 = sor.u32 %s176, %s177
    %p179 = scmp.eq.s32.totalorder %s178, 0
    %s181 = sadd.s32 %s180, 1
    %s182 = scalar_select %p179, %s180, %s181
    %p185 = pneg %p179
    %p186 = scmp.eq.s32.totalorder %s11, 1
    %p187 = por %p185, %p186
    %p188 = scmp.ne.s32.totalorder %s180, %s183
    %p189 = scmp.eq.s32.totalorder %s11, 0
    %p190 = por %p188, %p189
    %p191 = scmp.ne.s32.totalorder %s180, %s183
    %p192 = scmp.eq.s32.totalorder %s16, 1
    %p193 = por %p191, %p192
    %p194 = scmp.ne.s32.totalorder %s183, %s184
    %p195 = scmp.eq.s32.totalorder %s16, 0
    %p196 = por %p194, %p195
    %p197 = scmp.ne.s32.totalorder %s183, %s184
    %p198 = scmp.eq.s32.totalorder %s17, 1
    %p199 = por %p197, %p198
    %p201 = scmp.ne.s32.totalorder %s184, %s200
    %p202 = scmp.eq.s32.totalorder %s17, 0
    %p203 = por %p201, %p202
    %p204 = scmp.le.s32.totalorder 1, %s11
    %p205 = scmp.lt.s32.totalorder %s11, 3
    %p206 = pnand %p204, %p205
    %p207 = pneg %p206
    // Predicated region
    $region9: #{focal_loss_reg.1} parent=5 // pred_check
      _
    $region10: #{focal_loss_reg.1} parent=5 // pred_check_branch
      %209 = sbr.rel (%p206) target = $region12
    $region11: #{focal_loss_reg.1} parent=5 // pred_region
      %s210 = ssub.s32 %s11, 1
      // Predicated region
      $region13: #{focal_loss_reg.1} parent=11 // pred_check
        %p211 = pneg %p58
      $region14: #{focal_loss_reg.1} parent=11 // pred_check_branch
        %213 = sbr.rel (%p211) target = $region16
      $region15: #{focal_loss_reg.1} parent=11 // pred_region
        %s214 = sadd.s32 %s22, %s23
        %s215 = smul.u32 4, %s214
        %p216 = scmp.lt.s32.totalorder %s215, 3
        %s217 = scalar_select %p216, %s215, 3
        %s218 = smul.addr %s217, 8
        %s219 = scalar_lea.vmem %s0, %s218
        %s220 = sadd.s32 %s22, %s23
        %s221 = smul.u32 4, %s220
      $region16: #{focal_loss_reg.1} parent=11 // pred_fallthru
        _
      // Predicated region
      $region17: #{focal_loss_reg.1} parent=11 // pred_check
        %p222 = pneg %p86
      $region18: #{focal_loss_reg.1} parent=11 // pred_check_branch
        %224 = sbr.rel (%p222) target = $region20
      $region19: #{focal_loss_reg.1} parent=11 // pred_region
        %s225 = sadd.s32 %s22, %s23
        %s226 = smul.u32 4, %s225
        %p227 = scmp.lt.s32.totalorder %s226, 3
        %s228 = scalar_select %p227, %s226, 3
        %s229 = smul.addr %s228, 8
        %s230 = scalar_lea.vmem %s1, %s229
        %s231 = sadd.s32 %s22, %s23
        %s232 = smul.u32 4, %s231
      $region20: #{focal_loss_reg.1} parent=11 // pred_fallthru
        _
    $region12: #{focal_loss_reg.1} parent=5 // pred_fallthru
      _
    %p233 = scmp.lt.s32.totalorder %s11, 2
    // Predicated region
    $region21: #{focal_loss_reg.1} parent=5 // pred_check
      %p234 = pneg %p233
    $region22: #{focal_loss_reg.1} parent=5 // pred_check_branch
      %236 = sbr.rel (%p234) target = $region24
    $region23: #{focal_loss_reg.1} parent=5 // pred_region
      // Predicated region
      $region25: #{focal_loss_reg.1} parent=23 // pred_check
        %p237 = pneg %p110
      $region26: #{focal_loss_reg.1} parent=23 // pred_check_branch
        %239 = sbr.rel (%p237) target = $region28
      $region27: #{focal_loss_reg.1} parent=23 // pred_region
        %s240 = sadd.s32 %s19, %s20
        %s241 = smul.u32 4, %s240
        %p242 = scmp.lt.s32.totalorder %s18, 1
        %s243 = scalar_select %p242, %s18, 1
        %p244 = scmp.lt.s32.totalorder %s241, 3
        %s245 = scalar_select %p244, %s241, 3
        %s246 = smul.addr %s243, 4
        %s247 = sadd.s32 %s245, %s246
        %s248 = smul.addr %s247, 4
        %s249 = scalar_lea.vmem %s2, %s248
        %s250 = sadd.s32 %s19, %s20
        %s251 = smul.u32 4, %s250
      $region28: #{focal_loss_reg.1} parent=23 // pred_fallthru
        _
      // Predicated region
      $region29: #{focal_loss_reg.1} parent=23 // pred_check
        %p252 = pneg %p136
      $region30: #{focal_loss_reg.1} parent=23 // pred_check_branch
        %254 = sbr.rel (%p252) target = $region32
      $region31: #{focal_loss_reg.1} parent=23 // pred_region
        %p255 = scmp.lt.s32.totalorder %s18, 1
        %s256 = scalar_select %p255, %s18, 1
        %s257 = smul.addr %s256, 8
        %s258 = scalar_lea.vmem %s3, %s257
      $region32: #{focal_loss_reg.1} parent=23 // pred_fallthru
        _
      // Predicated region
      $region33: #{focal_loss_reg.1} parent=23 // pred_check
        %p259 = pneg %p162
      $region34: #{focal_loss_reg.1} parent=23 // pred_check_branch
        %261 = sbr.rel (%p259) target = $region36
      $region35: #{focal_loss_reg.1} parent=23 // pred_region
        %p262 = scmp.lt.s32.totalorder %s18, 1
        %s263 = scalar_select %p262, %s18, 1
        %s264 = smul.addr %s263, 8
        %s265 = scalar_lea.vmem %s4, %s264
      $region36: #{focal_loss_reg.1} parent=23 // pred_fallthru
        _
    $region24: #{focal_loss_reg.1} parent=5 // pred_fallthru
      _
    %p266 = scmp.le.s32.totalorder 1, %s11
    %p267 = scmp.lt.s32.totalorder %s11, 3
    %p268 = pnand %p266, %p267
    %p269 = pneg %p268
    // Predicated region
    $region37: #{focal_loss_reg.1} parent=5 // pred_check
      _
    $region38: #{focal_loss_reg.1} parent=5 // pred_check_branch
      %271 = sbr.rel (%p268) target = $region40
    $region39: #{focal_loss_reg.1} parent=5 // pred_region
      %s272 = ssub.s32 %s11, 1
      %s273 = sadd.s32 %s22, %s23
      %s274 = smul.u32 4, %s273
      %p275 = scmp.lt.s32.totalorder %s274, 3
      %s276 = scalar_select %p275, %s274, 3
      %s277 = smul.addr %s276, 8
      %s278 = scalar_lea.vmem %s0, %s277
      %p279 = pneg %p58
      %p280 = pneg %p55
      %s281 = sadd.s32 %s22, %s23
      %s282 = smul.u32 4, %s281
      %p283 = scmp.lt.s32.totalorder %s282, 3
      %s284 = scalar_select %p283, %s282, 3
      %s285 = smul.addr %s284, 8
      %s286 = scalar_lea.vmem %s1, %s285
      %p287 = pneg %p86
      %p288 = pneg %p83
      %s289 = sadd.s32 %s22, %s23
      %s290 = smul.u32 4, %s289
      %p291 = scmp.lt.s32.totalorder %s21, 1
      %s292 = scalar_select %p291, %s21, 1
      %p293 = scmp.lt.s32.totalorder %s290, 3
      %s294 = scalar_select %p293, %s290, 3
      %s295 = smul.addr %s292, 4
      %s296 = sadd.s32 %s294, %s295
      %s297 = smul.addr %s296, 4
      %s298 = scalar_lea.vmem %s2, %s297
      %p299 = pneg %p116
      %p300 = pneg %p113
      %p301 = scmp.lt.s32.totalorder %s21, 1
      %s302 = scalar_select %p301, %s21, 1
      %s303 = smul.addr %s302, 8
      %s304 = scalar_lea.vmem %s3, %s303
      %p305 = pneg %p142
      %p306 = pneg %p139
      %p307 = scmp.lt.s32.totalorder %s21, 1
      %s308 = scalar_select %p307, %s21, 1
      %s309 = smul.addr %s308, 8
      %s310 = scalar_lea.vmem %s4, %s309
      %p311 = pneg %p168
      %p312 = pneg %p165
      %p313 = pneg %p196
      %p314 = pneg %p193
      %p315 = scmp.lt.s32.totalorder %s21, 1
      %s316 = scalar_select %p315, %s21, 1
      %p317 = scmp.lt.s32.totalorder %s22, 0
      %s318 = scalar_select %p317, %s22, 0
      %s319 = smul.addr %s318, 4
      %s320 = smul.addr %s316, 4
      %s321 = sadd.s32 %s319, %s320
      %s322 = smul.addr %s321, 8
      %s323 = scalar_lea.vmem %s5, %s322
      %s324 = sadd.s32 %s22, %s23
      %s325 = smul.u32 4, %s324
      %p326 = scmp.lt.s32.totalorder %s325, 3
      %s327 = scalar_select %p326, %s325, 3
      %s328 = smul.addr %s327, 8
      %s329 = scalar_lea.vmem %s0, %s328
      %s330 = sadd.s32 %s22, %s23
      %s331 = smul.u32 4, %s330
      %s332 = sadd.s32 %s22, %s23
      %s333 = smul.u32 4, %s332
      %p334 = scmp.lt.s32.totalorder %s333, 3
      %s335 = scalar_select %p334, %s333, 3
      %s336 = smul.addr %s335, 8
      %s337 = scalar_lea.vmem %s1, %s336
      %s338 = sadd.s32 %s22, %s23
      %s339 = smul.u32 4, %s338
      %s340 = sadd.s32 %s22, %s23
      %s341 = smul.u32 4, %s340
      %p342 = scmp.lt.s32.totalorder %s21, 1
      %s343 = scalar_select %p342, %s21, 1
      %p344 = scmp.lt.s32.totalorder %s341, 3
      %s345 = scalar_select %p344, %s341, 3
      %s346 = smul.addr %s343, 4
      %s347 = sadd.s32 %s345, %s346
      %s348 = smul.addr %s347, 4
      %s349 = scalar_lea.vmem %s2, %s348
      %s350 = sadd.s32 %s22, %s23
      %s351 = smul.u32 4, %s350
      %p352 = scmp.lt.s32.totalorder %s21, 1
      %s353 = scalar_select %p352, %s21, 1
      %s354 = smul.addr %s353, 8
      %s355 = scalar_lea.vmem %s3, %s354
      %p356 = scmp.lt.s32.totalorder %s21, 1
      %s357 = scalar_select %p356, %s21, 1
      %s358 = smul.addr %s357, 8
      %s359 = scalar_lea.vmem %s4, %s358
      %p360 = scmp.lt.s32.totalorder %s21, 1
      %s361 = scalar_select %p360, %s21, 1
      %p362 = scmp.lt.s32.totalorder %s22, 0
      %s363 = scalar_select %p362, %s22, 0
      %s364 = smul.addr %s363, 4
      %s365 = smul.addr %s361, 4
      %s366 = sadd.s32 %s364, %s365
      %s367 = smul.addr %s366, 8
      %s368 = scalar_lea.vmem %s5, %s367
      %p369 = scmp.eq.s32.totalorder %s23, 0
      // Predicated region
      $region41: #{focal_loss_reg.1} parent=39 // pred_check
        %p370 = pneg %p369
      $region42: #{focal_loss_reg.1} parent=39 // pred_check_branch
        %372 = sbr.rel (%p370) target = $region44
      $region43: #{focal_loss_reg.1} parent=39 // pred_region
        %373 = vst [vmem:[%s368] sm:$0xff] 0.0
        %374 = vst [vmem:[%s368 + $0x8] sm:$0xff] 0.0
        %375 = vst [vmem:[%s368 + $0x10] sm:$0xff] 0.0
        %376 = vst [vmem:[%s368 + $0x18] sm:$0xff] 0.0
      $region44: #{focal_loss_reg.1} parent=39 // pred_fallthru
        _
      %v377 = vld [vmem:[%s355] sm:$0xff]
      %v378 = vld [vmem:[%s359] sm:$0xff]
      %v379 = vld [vmem:[%s329] sm:$0xff]
      %v380 = vld [vmem:[%s329 + $0x8] sm:$0xff]
      %v381 = vld [vmem:[%s329 + $0x10] sm:$0xff]
      %v382 = vld [vmem:[%s329 + $0x18] sm:$0xff]
      %v383 = vld [vmem:[%s337] sm:$0xff]
      %v384 = vld [vmem:[%s337 + $0x8] sm:$0xff]
      %v385 = vld [vmem:[%s337 + $0x10] sm:$0xff]
      %v386 = vld [vmem:[%s337 + $0x18] sm:$0xff]
      %v387 = vld [vmem:[%s349] sm:$0xff]
      %v388 = vld [vmem:[%s349 + $0x8] sm:$0xff]
      %v389 = vlaneseq
      %v390 = vshrl.u32 %v389, 7
      %v391 = vsub.s32 3, %v390
      %v392 = vrot.slane %v379, %v391
      %v393 = vlaneseq
      %v394 = vshrl.u32 %v393, 7
      %v395 = vsub.s32 3, %v394
      %v396 = vrot.slane %v380, %v395
      %v397 = vlaneseq
      %v398 = vshrl.u32 %v397, 7
      %v399 = vsub.s32 3, %v398
      %v400 = vrot.slane %v381, %v399
      %v401 = vlaneseq
      %v402 = vshrl.u32 %v401, 7
      %v403 = vsub.s32 3, %v402
      %v404 = vrot.slane %v382, %v403
      %406 = vset.pattern.permute.xlu0 2
      %407 = vperm.xlu0 %406, %v377
      %v408 = vpop.permute.xlu0 %407
      %v410 = vmin.f32 %v392, %v408
      %v411 = vmin.f32 %v396, %v408
      %v412 = vmin.f32 %v400, %v408
      %v413 = vmin.f32 %v404, %v408
      %v414 = vlaneseq
      %v415 = vshrl.u32 %v414, 7
      %v416 = vsub.s32 1, %v415
      %v417 = vrot.slane %v379, %v416
      %v418 = vlaneseq
      %v419 = vshrl.u32 %v418, 7
      %v420 = vsub.s32 1, %v419
      %v421 = vrot.slane %v380, %v420
      %v422 = vlaneseq
      %v423 = vshrl.u32 %v422, 7
      %v424 = vsub.s32 1, %v423
      %v425 = vrot.slane %v381, %v424
      %v426 = vlaneseq
      %v427 = vshrl.u32 %v426, 7
      %v428 = vsub.s32 1, %v427
      %v429 = vrot.slane %v382, %v428
      %430 = vset.pattern.permute.xlu0 0
      %431 = vperm.xlu0 %430, %v377
      %v432 = vpop.permute.xlu0 %431
      %v434 = vmax.f32 %v417, %v432
      %v435 = vmax.f32 %v421, %v432
      %v436 = vmax.f32 %v425, %v432
      %v437 = vmax.f32 %v429, %v432
      %v438 = vsub.f32 %v410, %v434
      %v439 = vsub.f32 %v411, %v435
      %v440 = vsub.f32 %v412, %v436
      %v441 = vsub.f32 %v413, %v437
      %v442 = vmax.f32 %v438, 0.0
      %v443 = vmax.f32 %v439, 0.0
      %v444 = vmax.f32 %v440, 0.0
      %v445 = vmax.f32 %v441, 0.0
      %v446 = vlaneseq
      %v447 = vshrl.u32 %v446, 7
      %v448 = vsub.s32 2, %v447
      %v449 = vrot.slane %v379, %v448
      %v450 = vlaneseq
      %v451 = vshrl.u32 %v450, 7
      %v452 = vsub.s32 2, %v451
      %v453 = vrot.slane %v380, %v452
      %v454 = vlaneseq
      %v455 = vshrl.u32 %v454, 7
      %v456 = vsub.s32 2, %v455
      %v457 = vrot.slane %v381, %v456
      %v458 = vlaneseq
      %v459 = vshrl.u32 %v458, 7
      %v460 = vsub.s32 2, %v459
      %v461 = vrot.slane %v382, %v460
      %462 = vset.pattern.permute.xlu0 3
      %463 = vperm.xlu0 %462, %v377
      %v464 = vpop.permute.xlu0 %463
      %v466 = vmin.f32 %v449, %v464
      %v467 = vmin.f32 %v453, %v464
      %v468 = vmin.f32 %v457, %v464
      %v469 = vmin.f32 %v461, %v464
      %v470 = vlaneseq
      %v471 = vshrl.u32 %v470, 7
      %v472 = vsub.s32 0, %v471
      %v473 = vrot.slane %v379, %v472
      %v474 = vlaneseq
      %v475 = vshrl.u32 %v474, 7
      %v476 = vsub.s32 0, %v475
      %v477 = vrot.slane %v380, %v476
      %v478 = vlaneseq
      %v479 = vshrl.u32 %v478, 7
      %v480 = vsub.s32 0, %v479
      %v481 = vrot.slane %v381, %v480
      %v482 = vlaneseq
      %v483 = vshrl.u32 %v482, 7
      %v484 = vsub.s32 0, %v483
      %v485 = vrot.slane %v382, %v484
      %486 = vset.pattern.permute.xlu0 1
      %487 = vperm.xlu0 %486, %v377
      %v488 = vpop.permute.xlu0 %487
      %v490 = vmax.f32 %v473, %v488
      %v491 = vmax.f32 %v477, %v488
      %v492 = vmax.f32 %v481, %v488
      %v493 = vmax.f32 %v485, %v488
      %v494 = vsub.f32 %v466, %v490
      %v495 = vsub.f32 %v467, %v491
      %v496 = vsub.f32 %v468, %v492
      %v497 = vsub.f32 %v469, %v493
      %v498 = vmax.f32 %v494, 0.0
      %v499 = vmax.f32 %v495, 0.0
      %v500 = vmax.f32 %v496, 0.0
      %v501 = vmax.f32 %v497, 0.0
      %v502 = vmul.f32 %v442, %v498
      %v503 = vmul.f32 %v443, %v499
      %v504 = vmul.f32 %v444, %v500
      %v505 = vmul.f32 %v445, %v501
      %v506 = vlaneseq
      %v507 = vshrl.u32 %v506, 7
      %v508 = vsub.s32 4, %v507
      %v509 = vrot.slane %v379, %v508
      %v510 = vlaneseq
      %v511 = vshrl.u32 %v510, 7
      %v512 = vsub.s32 4, %v511
      %v513 = vrot.slane %v380, %v512
      %v514 = vlaneseq
      %v515 = vshrl.u32 %v514, 7
      %v516 = vsub.s32 4, %v515
      %v517 = vrot.slane %v381, %v516
      %v518 = vlaneseq
      %v519 = vshrl.u32 %v518, 7
      %v520 = vsub.s32 4, %v519
      %v521 = vrot.slane %v382, %v520
      %522 = vset.pattern.permute.xlu0 4
      %523 = vperm.xlu0 %522, %v377
      %v524 = vpop.permute.xlu0 %523
      %v526 = vadd.f32 %v509, %v524
      %v527 = vadd.f32 %v513, %v524
      %v528 = vadd.f32 %v517, %v524
      %v529 = vadd.f32 %v521, %v524
      %v530 = vsub.f32 %v526, %v502
      %v531 = vsub.f32 %v527, %v503
      %v532 = vsub.f32 %v528, %v504
      %v533 = vsub.f32 %v529, %v505
      %v534 = vmax.f32 %v530, 1e-08
      %v535 = vmax.f32 %v531, 1e-08
      %v536 = vmax.f32 %v532, 1e-08
      %v537 = vmax.f32 %v533, 1e-08
      %v538 = vrcp.pop %v534
      %v539 = vrcp.pop %v535
      %v540 = vrcp.pop %v536
      %v541 = vrcp.pop %v537
      %v542 = vmul.f32 %v534, %v538
      %v543 = vmul.f32 %v535, %v539
      %v544 = vmul.f32 %v536, %v540
      %v545 = vmul.f32 %v537, %v541
      %v546 = vsub.f32 2.0, %v542
      %v547 = vsub.f32 2.0, %v543
      %v548 = vsub.f32 2.0, %v544
      %v549 = vsub.f32 2.0, %v545
      %v550 = vmul.f32 %v538, %v546
      %v551 = vmul.f32 %v539, %v547
      %v552 = vmul.f32 %v540, %v548
      %v553 = vmul.f32 %v541, %v549
      %v554 = vmul.f32 %v502, %v550
      %v555 = vmul.f32 %v503, %v551
      %v556 = vmul.f32 %v504, %v552
      %v557 = vmul.f32 %v505, %v553
      %v558 = vrot.slane %v554, 4
      %v559 = vmax.f32 %v554, %v558
      %v560 = vrot.slane %v559, 2
      %v561 = vmax.f32 %v559, %v560
      %v562 = vrot.slane %v561, 1
      %v563 = vmax.f32 %v561, %v562
      %v564 = vrot.slane %v555, 4
      %v565 = vmax.f32 %v555, %v564
      %v566 = vrot.slane %v565, 2
      %v567 = vmax.f32 %v565, %v566
      %v568 = vrot.slane %v567, 1
      %v569 = vmax.f32 %v567, %v568
      %v570 = vrot.slane %v556, 4
      %v571 = vmax.f32 %v556, %v570
      %v572 = vrot.slane %v571, 2
      %v573 = vmax.f32 %v571, %v572
      %v574 = vrot.slane %v573, 1
      %v575 = vmax.f32 %v573, %v574
      %v576 = vrot.slane %v557, 4
      %v577 = vmax.f32 %v557, %v576
      %v578 = vrot.slane %v577, 2
      %v579 = vmax.f32 %v577, %v578
      %v580 = vrot.slane %v579, 1
      %v581 = vmax.f32 %v579, %v580
      %v582 = vlaneseq
      %v583 = vshrl.u32 %v582, 7
      %vm584 = vcmp.eq.f32.partialorder %v554, %v563
      %vm585 = vcmp.eq.f32.partialorder %v555, %v569
      %vm586 = vcmp.eq.f32.partialorder %v556, %v575
      %vm587 = vcmp.eq.f32.partialorder %v557, %v581
      %v588 = vsel %vm584, %v583, 8
      %v589 = vsel %vm585, %v583, 8
      %v590 = vsel %vm586, %v583, 8
      %v591 = vsel %vm587, %v583, 8
      %v592 = vrot.slane %v588, 4
      %vm593 = vcmp.lt.s32.totalorder %v588, %v592
      %v594 = vsel %vm593, %v588, %v592
      %v595 = vrot.slane %v594, 2
      %vm596 = vcmp.lt.s32.totalorder %v594, %v595
      %v597 = vsel %vm596, %v594, %v595
      %v598 = vrot.slane %v597, 1
      %vm599 = vcmp.lt.s32.totalorder %v597, %v598
      %v600 = vsel %vm599, %v597, %v598
      %v601 = vrot.slane %v589, 4
      %vm602 = vcmp.lt.s32.totalorder %v589, %v601
      %v603 = vsel %vm602, %v589, %v601
      %v604 = vrot.slane %v603, 2
      %vm605 = vcmp.lt.s32.totalorder %v603, %v604
      %v606 = vsel %vm605, %v603, %v604
      %v607 = vrot.slane %v606, 1
      %vm608 = vcmp.lt.s32.totalorder %v606, %v607
      %v609 = vsel %vm608, %v606, %v607
      %v610 = vrot.slane %v590, 4
      %vm611 = vcmp.lt.s32.totalorder %v590, %v610
      %v612 = vsel %vm611, %v590, %v610
      %v613 = vrot.slane %v612, 2
      %vm614 = vcmp.lt.s32.totalorder %v612, %v613
      %v615 = vsel %vm614, %v612, %v613
      %v616 = vrot.slane %v615, 1
      %vm617 = vcmp.lt.s32.totalorder %v615, %v616
      %v618 = vsel %vm617, %v615, %v616
      %v619 = vrot.slane %v591, 4
      %vm620 = vcmp.lt.s32.totalorder %v591, %v619
      %v621 = vsel %vm620, %v591, %v619
      %v622 = vrot.slane %v621, 2
      %vm623 = vcmp.lt.s32.totalorder %v621, %v622
      %v624 = vsel %vm623, %v621, %v622
      %v625 = vrot.slane %v624, 1
      %vm626 = vcmp.lt.s32.totalorder %v624, %v625
      %v627 = vsel %vm626, %v624, %v625
      %vm628 = vcmp.ge.f32.partialorder %v563, 0.5
      %vm629 = vcmp.ge.f32.partialorder %v569, 0.5
      %vm630 = vcmp.ge.f32.partialorder %v575, 0.5
      %vm631 = vcmp.ge.f32.partialorder %v581, 0.5
      %vm632 = vcmp.eq.s32.totalorder %v583, %v600
      %vm633 = vcmp.eq.s32.totalorder %v583, %v609
      %vm634 = vcmp.eq.s32.totalorder %v583, %v618
      %vm635 = vcmp.eq.s32.totalorder %v583, %v627
      %v636 = vsel %vm632, 1, 0
      %v637 = vsel %vm633, 1, 0
      %v638 = vsel %vm634, 1, 0
      %v639 = vsel %vm635, 1, 0
      %v640 = vcvt.s32.f32 %v636
      %v641 = vcvt.s32.f32 %v637
      %v642 = vcvt.s32.f32 %v638
      %v643 = vcvt.s32.f32 %v639
      %vm644 = vcmask 64512
      %v646 = vsel %vm644, %v378, 0
      %v648 = vand.u32 %v641, 4294901760
      %649 = vmatprep.subr.mxu0 %v648
      %v650 = vand.u32 %v640, 4294901760
      %651 = vmatpush1.msra.mxu0 %v650
      %652 = vmatprep.subr.mxu0 0.0
      %653 = vmatpush1.msra.mxu0 0.0
      %654 = vmatprep.subr.mxu0 0.0
      %655 = vmatpush1.msra.mxu0 0.0
      %656 = vmatprep.subr.mxu0 0.0
      %657 = vmatpush1.msra.mxu0 0.0
      %658 = vmatprep.subr.mxu0 0.0
      %659 = vmatpush1.msra.mxu0 0.0
      %660 = vmatprep.subr.mxu0 0.0
      %661 = vmatpush1.msra.mxu0 0.0
      %662 = vmatprep.subr.mxu0 0.0
      %663 = vmatpush1.msra.mxu0 0.0
      %664 = vmatprep.subr.mxu0 0.0
      %665 = vmatpush1.msra.mxu0 0.0
      %666 = vmatprep.subr.mxu0 0.0
      %667 = vmatpush1.msra.mxu0 0.0
      %668 = vmatprep.subr.mxu0 0.0
      %669 = vmatpush1.msra.mxu0 0.0
      %670 = vmatprep.subr.mxu0 0.0
      %671 = vmatpush1.msra.mxu0 0.0
      %672 = vmatprep.subr.mxu0 0.0
      %673 = vmatpush1.msra.mxu0 0.0
      %674 = vmatprep.subr.mxu0 0.0
      %675 = vmatpush1.msra.mxu0 0.0
      %676 = vmatprep.subr.mxu0 0.0
      %677 = vmatpush1.msra.mxu0 0.0
      %678 = vmatprep.subr.mxu0 0.0
      %679 = vmatpush1.msra.mxu0 0.0
      %680 = vmatprep.subr.mxu0 0.0
      %681 = vmatpush1.msra.mxu0 0.0
      %682 = vmatprep.subr.mxu0 0.0
      %683 = vmatpush1.msra.mxu0 0.0
      %684 = vmatprep.subr.mxu0 0.0
      %685 = vmatpush1.msra.mxu0 0.0
      %686 = vmatprep.subr.mxu0 0.0
      %687 = vmatpush1.msra.mxu0 0.0
      %688 = vmatprep.subr.mxu0 0.0
      %689 = vmatpush1.msra.mxu0 0.0
      %690 = vmatprep.subr.mxu0 0.0
      %691 = vmatpush1.msra.mxu0 0.0
      %692 = vmatprep.subr.mxu0 0.0
      %693 = vmatpush1.msra.mxu0 0.0
      %694 = vmatprep.subr.mxu0 0.0
      %695 = vmatpush1.msra.mxu0 0.0
      %696 = vmatprep.subr.mxu0 0.0
      %697 = vmatpush1.msra.mxu0 0.0
      %698 = vmatprep.subr.mxu0 0.0
      %699 = vmatpush1.msra.mxu0 0.0
      %700 = vmatprep.subr.mxu0 0.0
      %701 = vmatpush1.msra.mxu0 0.0
      %702 = vmatprep.subr.mxu0 0.0
      %703 = vmatpush1.msra.mxu0 0.0
      %704 = vmatprep.subr.mxu0 0.0
      %705 = vmatpush1.msra.mxu0 0.0
      %706 = vmatprep.subr.mxu0 0.0
      %707 = vmatpush1.msra.mxu0 0.0
      %708 = vmatprep.subr.mxu0 0.0
      %709 = vmatpush1.msra.mxu0 0.0
      %710 = vmatprep.subr.mxu0 0.0
      %711 = vmatpush1.msra.mxu0 0.0
      %712 = vmatprep.subr.mxu0 0.0
      %713 = vmatpush1.msra.mxu0 0.0
      %714 = vmatprep.mubr.f32.mxu0 0.0
      %v715 = vand.u32 %v646, 4294901760
      %v716 = vsub.f32 %v646, %v715
      %v717 = vand.u32 %v716, 4294901760
      %v718 = vsub.f32 %v716, %v717
      %v719 = vand.u32 %v718, 4294901760
      %720 = vmatmul.mubr.f32.gmra.mrb[0].mxu0 %v719
      %v721 = vpop.f32.mrb[0].mxu0
      %v722 = vadd.f32 0.0, %v721
      %v723 = vpop.f32.mrb[0].mxu0
      %v724 = vadd.f32 0.0, %v723
      %725 = vdwg.mxu0
      %v726 = vand.u32 %v641, 4294901760
      %v727 = vsub.f32 %v641, %v726
      %v728 = vand.u32 %v727, 4294901760
      %v729 = vsub.f32 %v727, %v728
      %v730 = vand.u32 %v729, 4294901760
      %731 = vmatprep.subr.mxu0 %v730
      %v732 = vand.u32 %v640, 4294901760
      %v733 = vsub.f32 %v640, %v732
      %v734 = vand.u32 %v733, 4294901760
      %v735 = vsub.f32 %v733, %v734
      %v736 = vand.u32 %v735, 4294901760
      %737 = vmatpush1.msra.mxu0 %v736
      %738 = vmatprep.subr.mxu0 0.0
      %739 = vmatpush1.msra.mxu0 0.0
      %740 = vmatprep.subr.mxu0 0.0
      %741 = vmatpush1.msra.mxu0 0.0
      %742 = vmatprep.subr.mxu0 0.0
      %743 = vmatpush1.msra.mxu0 0.0
      %744 = vmatprep.subr.mxu0 0.0
      %745 = vmatpush1.msra.mxu0 0.0
      %746 = vmatprep.subr.mxu0 0.0
      %747 = vmatpush1.msra.mxu0 0.0
      %748 = vmatprep.subr.mxu0 0.0
      %749 = vmatpush1.msra.mxu0 0.0
      %750 = vmatprep.subr.mxu0 0.0
      %751 = vmatpush1.msra.mxu0 0.0
      %752 = vmatprep.subr.mxu0 0.0
      %753 = vmatpush1.msra.mxu0 0.0
      %754 = vmatprep.subr.mxu0 0.0
      %755 = vmatpush1.msra.mxu0 0.0
      %756 = vmatprep.subr.mxu0 0.0
      %757 = vmatpush1.msra.mxu0 0.0
      %758 = vmatprep.subr.mxu0 0.0
      %759 = vmatpush1.msra.mxu0 0.0
      %760 = vmatprep.subr.mxu0 0.0
      %761 = vmatpush1.msra.mxu0 0.0
      %762 = vmatprep.subr.mxu0 0.0
      %763 = vmatpush1.msra.mxu0 0.0
      %764 = vmatprep.subr.mxu0 0.0
      %765 = vmatpush1.msra.mxu0 0.0
      %766 = vmatprep.subr.mxu0 0.0
      %767 = vmatpush1.msra.mxu0 0.0
      %768 = vmatprep.subr.mxu0 0.0
      %769 = vmatpush1.msra.mxu0 0.0
      %770 = vmatprep.subr.mxu0 0.0
      %771 = vmatpush1.msra.mxu0 0.0
      %772 = vmatprep.subr.mxu0 0.0
      %773 = vmatpush1.msra.mxu0 0.0
      %774 = vmatprep.subr.mxu0 0.0
      %775 = vmatpush1.msra.mxu0 0.0
      %776 = vmatprep.subr.mxu0 0.0
      %777 = vmatpush1.msra.mxu0 0.0
      %778 = vmatprep.subr.mxu0 0.0
      %779 = vmatpush1.msra.mxu0 0.0
      %780 = vmatprep.subr.mxu0 0.0
      %781 = vmatpush1.msra.mxu0 0.0
      %782 = vmatprep.subr.mxu0 0.0
      %783 = vmatpush1.msra.mxu0 0.0
      %784 = vmatprep.subr.mxu0 0.0
      %785 = vmatpush1.msra.mxu0 0.0
      %786 = vmatprep.subr.mxu0 0.0
      %787 = vmatpush1.msra.mxu0 0.0
      %788 = vmatprep.subr.mxu0 0.0
      %789 = vmatpush1.msra.mxu0 0.0
      %790 = vmatprep.subr.mxu0 0.0
      %791 = vmatpush1.msra.mxu0 0.0
      %792 = vmatprep.subr.mxu0 0.0
      %793 = vmatpush1.msra.mxu0 0.0
      %794 = vmatprep.subr.mxu0 0.0
      %795 = vmatpush1.msra.mxu0 0.0
      %796 = vmatprep.subr.mxu0 0.0
      %797 = vmatpush1.msra.mxu0 0.0
      %798 = vmatprep.subr.mxu0 0.0
      %799 = vmatpush1.msra.mxu0 0.0
      %800 = vmatprep.mubr.f32.mxu0 0.0
      %v801 = vand.u32 %v646, 4294901760
      %802 = vmatmul.mubr.f32.gmra.mrb[0].mxu0 %v801
      %v803 = vpop.f32.mrb[0].mxu0
      %v804 = vadd.f32 %v722, %v803
      %v805 = vpop.f32.mrb[0].mxu0
      %v806 = vadd.f32 %v724, %v805
      %807 = vdwg.mxu0
      %v808 = vand.u32 %v641, 4294901760
      %v809 = vsub.f32 %v641, %v808
      %810 = vmatprep.subr.mxu0 %v809
      %v811 = vand.u32 %v640, 4294901760
      %v812 = vsub.f32 %v640, %v811
      %813 = vmatpush1.msra.mxu0 %v812
      %814 = vmatprep.subr.mxu0 0.0
      %815 = vmatpush1.msra.mxu0 0.0
      %816 = vmatprep.subr.mxu0 0.0
      %817 = vmatpush1.msra.mxu0 0.0
      %818 = vmatprep.subr.mxu0 0.0
      %819 = vmatpush1.msra.mxu0 0.0
      %820 = vmatprep.subr.mxu0 0.0
      %821 = vmatpush1.msra.mxu0 0.0
      %822 = vmatprep.subr.mxu0 0.0
      %823 = vmatpush1.msra.mxu0 0.0
      %824 = vmatprep.subr.mxu0 0.0
      %825 = vmatpush1.msra.mxu0 0.0
      %826 = vmatprep.subr.mxu0 0.0
      %827 = vmatpush1.msra.mxu0 0.0
      %828 = vmatprep.subr.mxu0 0.0
      %829 = vmatpush1.msra.mxu0 0.0
      %830 = vmatprep.subr.mxu0 0.0
      %831 = vmatpush1.msra.mxu0 0.0
      %832 = vmatprep.subr.mxu0 0.0
      %833 = vmatpush1.msra.mxu0 0.0
      %834 = vmatprep.subr.mxu0 0.0
      %835 = vmatpush1.msra.mxu0 0.0
      %836 = vmatprep.subr.mxu0 0.0
      %837 = vmatpush1.msra.mxu0 0.0
      %838 = vmatprep.subr.mxu0 0.0
      %839 = vmatpush1.msra.mxu0 0.0
      %840 = vmatprep.subr.mxu0 0.0
      %841 = vmatpush1.msra.mxu0 0.0
      %842 = vmatprep.subr.mxu0 0.0
      %843 = vmatpush1.msra.mxu0 0.0
      %844 = vmatprep.subr.mxu0 0.0
      %845 = vmatpush1.msra.mxu0 0.0
      %846 = vmatprep.subr.mxu0 0.0
      %847 = vmatpush1.msra.mxu0 0.0
      %848 = vmatprep.subr.mxu0 0.0
      %849 = vmatpush1.msra.mxu0 0.0
      %850 = vmatprep.subr.mxu0 0.0
      %851 = vmatpush1.msra.mxu0 0.0
      %852 = vmatprep.subr.mxu0 0.0
      %853 = vmatpush1.msra.mxu0 0.0
      %854 = vmatprep.subr.mxu0 0.0
      %855 = vmatpush1.msra.mxu0 0.0
      %856 = vmatprep.subr.mxu0 0.0
      %857 = vmatpush1.msra.mxu0 0.0
      %858 = vmatprep.subr.mxu0 0.0
      %859 = vmatpush1.msra.mxu0 0.0
      %860 = vmatprep.subr.mxu0 0.0
      %861 = vmatpush1.msra.mxu0 0.0
      %862 = vmatprep.subr.mxu0 0.0
      %863 = vmatpush1.msra.mxu0 0.0
      %864 = vmatprep.subr.mxu0 0.0
      %865 = vmatpush1.msra.mxu0 0.0
      %866 = vmatprep.subr.mxu0 0.0
      %867 = vmatpush1.msra.mxu0 0.0
      %868 = vmatprep.subr.mxu0 0.0
      %869 = vmatpush1.msra.mxu0 0.0
      %870 = vmatprep.subr.mxu0 0.0
      %871 = vmatpush1.msra.mxu0 0.0
      %872 = vmatprep.subr.mxu0 0.0
      %873 = vmatpush1.msra.mxu0 0.0
      %874 = vmatprep.subr.mxu0 0.0
      %875 = vmatpush1.msra.mxu0 0.0
      %876 = vmatprep.mubr.f32.mxu0 0.0
      %v877 = vand.u32 %v646, 4294901760
      %v878 = vsub.f32 %v646, %v877
      %879 = vmatmul.mubr.f32.gmra.mrb[0].mxu0 %v878
      %v880 = vpop.f32.mrb[0].mxu0
      %v881 = vadd.f32 %v804, %v880
      %v882 = vpop.f32.mrb[0].mxu0
      %v883 = vadd.f32 %v806, %v882
      %884 = vdwg.mxu0
      %v885 = vand.u32 %v641, 4294901760
      %886 = vmatprep.subr.mxu0 %v885
      %v887 = vand.u32 %v640, 4294901760
      %888 = vmatpush1.msra.mxu0 %v887
      %889 = vmatprep.subr.mxu0 0.0
      %890 = vmatpush1.msra.mxu0 0.0
      %891 = vmatprep.subr.mxu0 0.0
      %892 = vmatpush1.msra.mxu0 0.0
      %893 = vmatprep.subr.mxu0 0.0
      %894 = vmatpush1.msra.mxu0 0.0
      %895 = vmatprep.subr.mxu0 0.0
      %896 = vmatpush1.msra.mxu0 0.0
      %897 = vmatprep.subr.mxu0 0.0
      %898 = vmatpush1.msra.mxu0 0.0
      %899 = vmatprep.subr.mxu0 0.0
      %900 = vmatpush1.msra.mxu0 0.0
      %901 = vmatprep.subr.mxu0 0.0
      %902 = vmatpush1.msra.mxu0 0.0
      %903 = vmatprep.subr.mxu0 0.0
      %904 = vmatpush1.msra.mxu0 0.0
      %905 = vmatprep.subr.mxu0 0.0
      %906 = vmatpush1.msra.mxu0 0.0
      %907 = vmatprep.subr.mxu0 0.0
      %908 = vmatpush1.msra.mxu0 0.0
      %909 = vmatprep.subr.mxu0 0.0
      %910 = vmatpush1.msra.mxu0 0.0
      %911 = vmatprep.subr.mxu0 0.0
      %912 = vmatpush1.msra.mxu0 0.0
      %913 = vmatprep.subr.mxu0 0.0
      %914 = vmatpush1.msra.mxu0 0.0
      %915 = vmatprep.subr.mxu0 0.0
      %916 = vmatpush1.msra.mxu0 0.0
      %917 = vmatprep.subr.mxu0 0.0
      %918 = vmatpush1.msra.mxu0 0.0
      %919 = vmatprep.subr.mxu0 0.0
      %920 = vmatpush1.msra.mxu0 0.0
      %921 = vmatprep.subr.mxu0 0.0
      %922 = vmatpush1.msra.mxu0 0.0
      %923 = vmatprep.subr.mxu0 0.0
      %924 = vmatpush1.msra.mxu0 0.0
      %925 = vmatprep.subr.mxu0 0.0
      %926 = vmatpush1.msra.mxu0 0.0
      %927 = vmatprep.subr.mxu0 0.0
      %928 = vmatpush1.msra.mxu0 0.0
      %929 = vmatprep.subr.mxu0 0.0
      %930 = vmatpush1.msra.mxu0 0.0
      %931 = vmatprep.subr.mxu0 0.0
      %932 = vmatpush1.msra.mxu0 0.0
      %933 = vmatprep.subr.mxu0 0.0
      %934 = vmatpush1.msra.mxu0 0.0
      %935 = vmatprep.subr.mxu0 0.0
      %936 = vmatpush1.msra.mxu0 0.0
      %937 = vmatprep.subr.mxu0 0.0
      %938 = vmatpush1.msra.mxu0 0.0
      %939 = vmatprep.subr.mxu0 0.0
      %940 = vmatpush1.msra.mxu0 0.0
      %941 = vmatprep.subr.mxu0 0.0
      %942 = vmatpush1.msra.mxu0 0.0
      %943 = vmatprep.subr.mxu0 0.0
      %944 = vmatpush1.msra.mxu0 0.0
      %945 = vmatprep.subr.mxu0 0.0
      %946 = vmatpush1.msra.mxu0 0.0
      %947 = vmatprep.subr.mxu0 0.0
      %948 = vmatpush1.msra.mxu0 0.0
      %949 = vmatprep.subr.mxu0 0.0
      %950 = vmatpush1.msra.mxu0 0.0
      %951 = vmatprep.mubr.f32.mxu0 0.0
      %v952 = vand.u32 %v646, 4294901760
      %v953 = vsub.f32 %v646, %v952
      %v954 = vand.u32 %v953, 4294901760
      %955 = vmatmul.mubr.f32.gmra.mrb[0].mxu0 %v954
      %v956 = vpop.f32.mrb[0].mxu0
      %v957 = vadd.f32 %v881, %v956
      %v958 = vpop.f32.mrb[0].mxu0
      %v959 = vadd.f32 %v883, %v958
      %960 = vdwg.mxu0
      %v961 = vand.u32 %v641, 4294901760
      %v962 = vsub.f32 %v641, %v961
      %v963 = vand.u32 %v962, 4294901760
      %964 = vmatprep.subr.mxu0 %v963
      %v965 = vand.u32 %v640, 4294901760
      %v966 = vsub.f32 %v640, %v965
      %v967 = vand.u32 %v966, 4294901760
      %968 = vmatpush1.msra.mxu0 %v967
      %969 = vmatprep.subr.mxu0 0.0
      %970 = vmatpush1.msra.mxu0 0.0
      %971 = vmatprep.subr.mxu0 0.0
      %972 = vmatpush1.msra.mxu0 0.0
      %973 = vmatprep.subr.mxu0 0.0
      %974 = vmatpush1.msra.mxu0 0.0
      %975 = vmatprep.subr.mxu0 0.0
      %976 = vmatpush1.msra.mxu0 0.0
      %977 = vmatprep.subr.mxu0 0.0
      %978 = vmatpush1.msra.mxu0 0.0
      %979 = vmatprep.subr.mxu0 0.0
      %980 = vmatpush1.msra.mxu0 0.0
      %981 = vmatprep.subr.mxu0 0.0
      %982 = vmatpush1.msra.mxu0 0.0
      %983 = vmatprep.subr.mxu0 0.0
      %984 = vmatpush1.msra.mxu0 0.0
      %985 = vmatprep.subr.mxu0 0.0
      %986 = vmatpush1.msra.mxu0 0.0
      %987 = vmatprep.subr.mxu0 0.0
      %988 = vmatpush1.msra.mxu0 0.0
      %989 = vmatprep.subr.mxu0 0.0
      %990 = vmatpush1.msra.mxu0 0.0
      %991 = vmatprep.subr.mxu0 0.0
      %992 = vmatpush1.msra.mxu0 0.0
      %993 = vmatprep.subr.mxu0 0.0
      %994 = vmatpush1.msra.mxu0 0.0
      %995 = vmatprep.subr.mxu0 0.0
      %996 = vmatpush1.msra.mxu0 0.0
      %997 = vmatprep.subr.mxu0 0.0
      %998 = vmatpush1.msra.mxu0 0.0
      %999 = vmatprep.subr.mxu0 0.0
      %1000 = vmatpush1.msra.mxu0 0.0
      %1001 = vmatprep.subr.mxu0 0.0
      %1002 = vmatpush1.msra.mxu0 0.0
      %1003 = vmatprep.subr.mxu0 0.0
      %1004 = vmatpush1.msra.mxu0 0.0
      %1005 = vmatprep.subr.mxu0 0.0
      %1006 = vmatpush1.msra.mxu0 0.0
      %1007 = vmatprep.subr.mxu0 0.0
      %1008 = vmatpush1.msra.mxu0 0.0
      %1009 = vmatprep.subr.mxu0 0.0
      %1010 = vmatpush1.msra.mxu0 0.0
      %1011 = vmatprep.subr.mxu0 0.0
      %1012 = vmatpush1.msra.mxu0 0.0
      %1013 = vmatprep.subr.mxu0 0.0
      %1014 = vmatpush1.msra.mxu0 0.0
      %1015 = vmatprep.subr.mxu0 0.0
      %1016 = vmatpush1.msra.mxu0 0.0
      %1017 = vmatprep.subr.mxu0 0.0
      %1018 = vmatpush1.msra.mxu0 0.0
      %1019 = vmatprep.subr.mxu0 0.0
      %1020 = vmatpush1.msra.mxu0 0.0
      %1021 = vmatprep.subr.mxu0 0.0
      %1022 = vmatpush1.msra.mxu0 0.0
      %1023 = vmatprep.subr.mxu0 0.0
      %1024 = vmatpush1.msra.mxu0 0.0
      %1025 = vmatprep.subr.mxu0 0.0
      %1026 = vmatpush1.msra.mxu0 0.0
      %1027 = vmatprep.subr.mxu0 0.0
      %1028 = vmatpush1.msra.mxu0 0.0
      %1029 = vmatprep.subr.mxu0 0.0
      %1030 = vmatpush1.msra.mxu0 0.0
      %1031 = vmatprep.mubr.f32.mxu0 0.0
      %v1032 = vand.u32 %v646, 4294901760
      %1033 = vmatmul.mubr.f32.gmra.mrb[0].mxu0 %v1032
      %v1034 = vpop.f32.mrb[0].mxu0
      %v1035 = vadd.f32 %v957, %v1034
      %v1036 = vpop.f32.mrb[0].mxu0
      %v1037 = vadd.f32 %v959, %v1036
      %1038 = vdwg.mxu0
      %v1039 = vand.u32 %v641, 4294901760
      %1040 = vmatprep.subr.mxu0 %v1039
      %v1041 = vand.u32 %v640, 4294901760
      %1042 = vmatpush1.msra.mxu0 %v1041
      %1043 = vmatprep.subr.mxu0 0.0
      %1044 = vmatpush1.msra.mxu0 0.0
      %1045 = vmatprep.subr.mxu0 0.0
      %1046 = vmatpush1.msra.mxu0 0.0
      %1047 = vmatprep.subr.mxu0 0.0
      %1048 = vmatpush1.msra.mxu0 0.0
      %1049 = vmatprep.subr.mxu0 0.0
      %1050 = vmatpush1.msra.mxu0 0.0
      %1051 = vmatprep.subr.mxu0 0.0
      %1052 = vmatpush1.msra.mxu0 0.0
      %1053 = vmatprep.subr.mxu0 0.0
      %1054 = vmatpush1.msra.mxu0 0.0
      %1055 = vmatprep.subr.mxu0 0.0
      %1056 = vmatpush1.msra.mxu0 0.0
      %1057 = vmatprep.subr.mxu0 0.0
      %1058 = vmatpush1.msra.mxu0 0.0
      %1059 = vmatprep.subr.mxu0 0.0
      %1060 = vmatpush1.msra.mxu0 0.0
      %1061 = vmatprep.subr.mxu0 0.0
      %1062 = vmatpush1.msra.mxu0 0.0
      %1063 = vmatprep.subr.mxu0 0.0
      %1064 = vmatpush1.msra.mxu0 0.0
      %1065 = vmatprep.subr.mxu0 0.0
      %1066 = vmatpush1.msra.mxu0 0.0
      %1067 = vmatprep.subr.mxu0 0.0
      %1068 = vmatpush1.msra.mxu0 0.0
      %1069 = vmatprep.subr.mxu0 0.0
      %1070 = vmatpush1.msra.mxu0 0.0
      %1071 = vmatprep.subr.mxu0 0.0
      %1072 = vmatpush1.msra.mxu0 0.0
      %1073 = vmatprep.subr.mxu0 0.0
      %1074 = vmatpush1.msra.mxu0 0.0
      %1075 = vmatprep.subr.mxu0 0.0
      %1076 = vmatpush1.msra.mxu0 0.0
      %1077 = vmatprep.subr.mxu0 0.0
      %1078 = vmatpush1.msra.mxu0 0.0
      %1079 = vmatprep.subr.mxu0 0.0
      %1080 = vmatpush1.msra.mxu0 0.0
      %1081 = vmatprep.subr.mxu0 0.0
      %1082 = vmatpush1.msra.mxu0 0.0
      %1083 = vmatprep.subr.mxu0 0.0
      %1084 = vmatpush1.msra.mxu0 0.0
      %1085 = vmatprep.subr.mxu0 0.0
      %1086 = vmatpush1.msra.mxu0 0.0
      %1087 = vmatprep.subr.mxu0 0.0
      %1088 = vmatpush1.msra.mxu0 0.0
      %1089 = vmatprep.subr.mxu0 0.0
      %1090 = vmatpush1.msra.mxu0 0.0
      %1091 = vmatprep.subr.mxu0 0.0
      %1092 = vmatpush1.msra.mxu0 0.0
      %1093 = vmatprep.subr.mxu0 0.0
      %1094 = vmatpush1.msra.mxu0 0.0
      %1095 = vmatprep.subr.mxu0 0.0
      %1096 = vmatpush1.msra.mxu0 0.0
      %1097 = vmatprep.subr.mxu0 0.0
      %1098 = vmatpush1.msra.mxu0 0.0
      %1099 = vmatprep.subr.mxu0 0.0
      %1100 = vmatpush1.msra.mxu0 0.0
      %1101 = vmatprep.subr.mxu0 0.0
      %1102 = vmatpush1.msra.mxu0 0.0
      %1103 = vmatprep.subr.mxu0 0.0
      %1104 = vmatpush1.msra.mxu0 0.0
      %1105 = vmatprep.mubr.f32.mxu0 0.0
      %v1106 = vand.u32 %v646, 4294901760
      %1107 = vmatmul.mubr.f32.gmra.mrb[0].mxu0 %v1106
      %v1108 = vpop.f32.mrb[0].mxu0
      %v1109 = vadd.f32 %v1035, %v1108
      %v1110 = vpop.f32.mrb[0].mxu0
      %v1111 = vadd.f32 %v1037, %v1110
      %1112 = vdwg.mxu0
      %v1113 = vand.u32 %v643, 4294901760
      %1114 = vmatprep.subr.mxu0 %v1113
      %v1115 = vand.u32 %v642, 4294901760
      %1116 = vmatpush1.msra.mxu0 %v1115
      %1117 = vmatprep.subr.mxu0 0.0
      %1118 = vmatpush1.msra.mxu0 0.0
      %1119 = vmatprep.subr.mxu0 0.0
      %1120 = vmatpush1.msra.mxu0 0.0
      %1121 = vmatprep.subr.mxu0 0.0
      %1122 = vmatpush1.msra.mxu0 0.0
      %1123 = vmatprep.subr.mxu0 0.0
      %1124 = vmatpush1.msra.mxu0 0.0
      %1125 = vmatprep.subr.mxu0 0.0
      %1126 = vmatpush1.msra.mxu0 0.0
      %1127 = vmatprep.subr.mxu0 0.0
      %1128 = vmatpush1.msra.mxu0 0.0
      %1129 = vmatprep.subr.mxu0 0.0
      %1130 = vmatpush1.msra.mxu0 0.0
      %1131 = vmatprep.subr.mxu0 0.0
      %1132 = vmatpush1.msra.mxu0 0.0
      %1133 = vmatprep.subr.mxu0 0.0
      %1134 = vmatpush1.msra.mxu0 0.0
      %1135 = vmatprep.subr.mxu0 0.0
      %1136 = vmatpush1.msra.mxu0 0.0
      %1137 = vmatprep.subr.mxu0 0.0
      %1138 = vmatpush1.msra.mxu0 0.0
      %1139 = vmatprep.subr.mxu0 0.0
      %1140 = vmatpush1.msra.mxu0 0.0
      %1141 = vmatprep.subr.mxu0 0.0
      %1142 = vmatpush1.msra.mxu0 0.0
      %1143 = vmatprep.subr.mxu0 0.0
      %1144 = vmatpush1.msra.mxu0 0.0
      %1145 = vmatprep.subr.mxu0 0.0
      %1146 = vmatpush1.msra.mxu0 0.0
      %1147 = vmatprep.subr.mxu0 0.0
      %1148 = vmatpush1.msra.mxu0 0.0
      %1149 = vmatprep.subr.mxu0 0.0
      %1150 = vmatpush1.msra.mxu0 0.0
      %1151 = vmatprep.subr.mxu0 0.0
      %1152 = vmatpush1.msra.mxu0 0.0
      %1153 = vmatprep.subr.mxu0 0.0
      %1154 = vmatpush1.msra.mxu0 0.0
      %1155 = vmatprep.subr.mxu0 0.0
      %1156 = vmatpush1.msra.mxu0 0.0
      %1157 = vmatprep.subr.mxu0 0.0
      %1158 = vmatpush1.msra.mxu0 0.0
      %1159 = vmatprep.subr.mxu0 0.0
      %1160 = vmatpush1.msra.mxu0 0.0
      %1161 = vmatprep.subr.mxu0 0.0
      %1162 = vmatpush1.msra.mxu0 0.0
      %1163 = vmatprep.subr.mxu0 0.0
      %1164 = vmatpush1.msra.mxu0 0.0
      %1165 = vmatprep.subr.mxu0 0.0
      %1166 = vmatpush1.msra.mxu0 0.0
      %1167 = vmatprep.subr.mxu0 0.0
      %1168 = vmatpush1.msra.mxu0 0.0
      %1169 = vmatprep.subr.mxu0 0.0
      %1170 = vmatpush1.msra.mxu0 0.0
      %1171 = vmatprep.subr.mxu0 0.0
      %1172 = vmatpush1.msra.mxu0 0.0
      %1173 = vmatprep.subr.mxu0 0.0
      %1174 = vmatpush1.msra.mxu0 0.0
      %1175 = vmatprep.subr.mxu0 0.0
      %1176 = vmatpush1.msra.mxu0 0.0
      %1177 = vmatprep.subr.mxu0 0.0
      %1178 = vmatpush1.msra.mxu0 0.0
      %1179 = vmatprep.mubr.f32.mxu0 0.0
      %v1180 = vand.u32 %v646, 4294901760
      %v1181 = vsub.f32 %v646, %v1180
      %v1182 = vand.u32 %v1181, 4294901760
      %v1183 = vsub.f32 %v1181, %v1182
      %v1184 = vand.u32 %v1183, 4294901760
      %1185 = vmatmul.mubr.f32.gmra.mrb[0].mxu0 %v1184
      %v1186 = vpop.f32.mrb[0].mxu0
      %v1187 = vadd.f32 0.0, %v1186
      %v1188 = vpop.f32.mrb[0].mxu0
      %v1189 = vadd.f32 0.0, %v1188
      %1190 = vdwg.mxu0
      %v1191 = vand.u32 %v643, 4294901760
      %v1192 = vsub.f32 %v643, %v1191
      %v1193 = vand.u32 %v1192, 4294901760
      %v1194 = vsub.f32 %v1192, %v1193
      %v1195 = vand.u32 %v1194, 4294901760
      %1196 = vmatprep.subr.mxu0 %v1195
      %v1197 = vand.u32 %v642, 4294901760
      %v1198 = vsub.f32 %v642, %v1197
      %v1199 = vand.u32 %v1198, 4294901760
      %v1200 = vsub.f32 %v1198, %v1199
      %v1201 = vand.u32 %v1200, 4294901760
      %1202 = vmatpush1.msra.mxu0 %v1201
      %1203 = vmatprep.subr.mxu0 0.0
      %1204 = vmatpush1.msra.mxu0 0.0
      %1205 = vmatprep.subr.mxu0 0.0
      %1206 = vmatpush1.msra.mxu0 0.0
      %1207 = vmatprep.subr.mxu0 0.0
      %1208 = vmatpush1.msra.mxu0 0.0
      %1209 = vmatprep.subr.mxu0 0.0
      %1210 = vmatpush1.msra.mxu0 0.0
      %1211 = vmatprep.subr.mxu0 0.0
      %1212 = vmatpush1.msra.mxu0 0.0
      %1213 = vmatprep.subr.mxu0 0.0
      %1214 = vmatpush1.msra.mxu0 0.0
      %1215 = vmatprep.subr.mxu0 0.0
      %1216 = vmatpush1.msra.mxu0 0.0
      %1217 = vmatprep.subr.mxu0 0.0
      %1218 = vmatpush1.msra.mxu0 0.0
      %1219 = vmatprep.subr.mxu0 0.0
      %1220 = vmatpush1.msra.mxu0 0.0
      %1221 = vmatprep.subr.mxu0 0.0
      %1222 = vmatpush1.msra.mxu0 0.0
      %1223 = vmatprep.subr.mxu0 0.0
      %1224 = vmatpush1.msra.mxu0 0.0
      %1225 = vmatprep.subr.mxu0 0.0
      %1226 = vmatpush1.msra.mxu0 0.0
      %1227 = vmatprep.subr.mxu0 0.0
      %1228 = vmatpush1.msra.mxu0 0.0
      %1229 = vmatprep.subr.mxu0 0.0
      %1230 = vmatpush1.msra.mxu0 0.0
      %1231 = vmatprep.subr.mxu0 0.0
      %1232 = vmatpush1.msra.mxu0 0.0
      %1233 = vmatprep.subr.mxu0 0.0
      %1234 = vmatpush1.msra.mxu0 0.0
      %1235 = vmatprep.subr.mxu0 0.0
      %1236 = vmatpush1.msra.mxu0 0.0
      %1237 = vmatprep.subr.mxu0 0.0
      %1238 = vmatpush1.msra.mxu0 0.0
      %1239 = vmatprep.subr.mxu0 0.0
      %1240 = vmatpush1.msra.mxu0 0.0
      %1241 = vmatprep.subr.mxu0 0.0
      %1242 = vmatpush1.msra.mxu0 0.0
      %1243 = vmatprep.subr.mxu0 0.0
      %1244 = vmatpush1.msra.mxu0 0.0
      %1245 = vmatprep.subr.mxu0 0.0
      %1246 = vmatpush1.msra.mxu0 0.0
      %1247 = vmatprep.subr.mxu0 0.0
      %1248 = vmatpush1.msra.mxu0 0.0
      %1249 = vmatprep.subr.mxu0 0.0
      %1250 = vmatpush1.msra.mxu0 0.0
      %1251 = vmatprep.subr.mxu0 0.0
      %1252 = vmatpush1.msra.mxu0 0.0
      %1253 = vmatprep.subr.mxu0 0.0
      %1254 = vmatpush1.msra.mxu0 0.0
      %1255 = vmatprep.subr.mxu0 0.0
      %1256 = vmatpush1.msra.mxu0 0.0
      %1257 = vmatprep.subr.mxu0 0.0
      %1258 = vmatpush1.msra.mxu0 0.0
      %1259 = vmatprep.subr.mxu0 0.0
      %1260 = vmatpush1.msra.mxu0 0.0
      %1261 = vmatprep.subr.mxu0 0.0
      %1262 = vmatpush1.msra.mxu0 0.0
      %1263 = vmatprep.subr.mxu0 0.0
      %1264 = vmatpush1.msra.mxu0 0.0
      %1265 = vmatprep.mubr.f32.mxu0 0.0
      %v1266 = vand.u32 %v646, 4294901760
      %1267 = vmatmul.mubr.f32.gmra.mrb[0].mxu0 %v1266
      %v1268 = vpop.f32.mrb[0].mxu0
      %v1269 = vadd.f32 %v1187, %v1268
      %v1270 = vpop.f32.mrb[0].mxu0
      %v1271 = vadd.f32 %v1189, %v1270
      %1272 = vdwg.mxu0
      %v1273 = vand.u32 %v643, 4294901760
      %v1274 = vsub.f32 %v643, %v1273
      %1275 = vmatprep.subr.mxu0 %v1274
      %v1276 = vand.u32 %v642, 4294901760
      %v1277 = vsub.f32 %v642, %v1276
      %1278 = vmatpush1.msra.mxu0 %v1277
      %1279 = vmatprep.subr.mxu0 0.0
      %1280 = vmatpush1.msra.mxu0 0.0
      %1281 = vmatprep.subr.mxu0 0.0
      %1282 = vmatpush1.msra.mxu0 0.0
      %1283 = vmatprep.subr.mxu0 0.0
      %1284 = vmatpush1.msra.mxu0 0.0
      %1285 = vmatprep.subr.mxu0 0.0
      %1286 = vmatpush1.msra.mxu0 0.0
      %1287 = vmatprep.subr.mxu0 0.0
      %1288 = vmatpush1.msra.mxu0 0.0
      %1289 = vmatprep.subr.mxu0 0.0
      %1290 = vmatpush1.msra.mxu0 0.0
      %1291 = vmatprep.subr.mxu0 0.0
      %1292 = vmatpush1.msra.mxu0 0.0
      %1293 = vmatprep.subr.mxu0 0.0
      %1294 = vmatpush1.msra.mxu0 0.0
      %1295 = vmatprep.subr.mxu0 0.0
      %1296 = vmatpush1.msra.mxu0 0.0
      %1297 = vmatprep.subr.mxu0 0.0
      %1298 = vmatpush1.msra.mxu0 0.0
      %1299 = vmatprep.subr.mxu0 0.0
      %1300 = vmatpush1.msra.mxu0 0.0
      %1301 = vmatprep.subr.mxu0 0.0
      %1302 = vmatpush1.msra.mxu0 0.0
      %1303 = vmatprep.subr.mxu0 0.0
      %1304 = vmatpush1.msra.mxu0 0.0
      %1305 = vmatprep.subr.mxu0 0.0
      %1306 = vmatpush1.msra.mxu0 0.0
      %1307 = vmatprep.subr.mxu0 0.0
      %1308 = vmatpush1.msra.mxu0 0.0
      %1309 = vmatprep.subr.mxu0 0.0
      %1310 = vmatpush1.msra.mxu0 0.0
      %1311 = vmatprep.subr.mxu0 0.0
      %1312 = vmatpush1.msra.mxu0 0.0
      %1313 = vmatprep.subr.mxu0 0.0
      %1314 = vmatpush1.msra.mxu0 0.0
      %1315 = vmatprep.subr.mxu0 0.0
      %1316 = vmatpush1.msra.mxu0 0.0
      %1317 = vmatprep.subr.mxu0 0.0
      %1318 = vmatpush1.msra.mxu0 0.0
      %1319 = vmatprep.subr.mxu0 0.0
      %1320 = vmatpush1.msra.mxu0 0.0
      %1321 = vmatprep.subr.mxu0 0.0
      %1322 = vmatpush1.msra.mxu0 0.0
      %1323 = vmatprep.subr.mxu0 0.0
      %1324 = vmatpush1.msra.mxu0 0.0
      %1325 = vmatprep.subr.mxu0 0.0
      %1326 = vmatpush1.msra.mxu0 0.0
      %1327 = vmatprep.subr.mxu0 0.0
      %1328 = vmatpush1.msra.mxu0 0.0
      %1329 = vmatprep.subr.mxu0 0.0
      %1330 = vmatpush1.msra.mxu0 0.0
      %1331 = vmatprep.subr.mxu0 0.0
      %1332 = vmatpush1.msra.mxu0 0.0
      %1333 = vmatprep.subr.mxu0 0.0
      %1334 = vmatpush1.msra.mxu0 0.0
      %1335 = vmatprep.subr.mxu0 0.0
      %1336 = vmatpush1.msra.mxu0 0.0
      %1337 = vmatprep.subr.mxu0 0.0
      %1338 = vmatpush1.msra.mxu0 0.0
      %1339 = vmatprep.subr.mxu0 0.0
      %1340 = vmatpush1.msra.mxu0 0.0
      %1341 = vmatprep.mubr.f32.mxu0 0.0
      %v1342 = vand.u32 %v646, 4294901760
      %v1343 = vsub.f32 %v646, %v1342
      %1344 = vmatmul.mubr.f32.gmra.mrb[0].mxu0 %v1343
      %v1345 = vpop.f32.mrb[0].mxu0
      %v1346 = vadd.f32 %v1269, %v1345
      %v1347 = vpop.f32.mrb[0].mxu0
      %v1348 = vadd.f32 %v1271, %v1347
      %1349 = vdwg.mxu0
      %v1350 = vand.u32 %v643, 4294901760
      %1351 = vmatprep.subr.mxu0 %v1350
      %v1352 = vand.u32 %v642, 4294901760
      %1353 = vmatpush1.msra.mxu0 %v1352
      %1354 = vmatprep.subr.mxu0 0.0
      %1355 = vmatpush1.msra.mxu0 0.0
      %1356 = vmatprep.subr.mxu0 0.0
      %1357 = vmatpush1.msra.mxu0 0.0
      %1358 = vmatprep.subr.mxu0 0.0
      %1359 = vmatpush1.msra.mxu0 0.0
      %1360 = vmatprep.subr.mxu0 0.0
      %1361 = vmatpush1.msra.mxu0 0.0
      %1362 = vmatprep.subr.mxu0 0.0
      %1363 = vmatpush1.msra.mxu0 0.0
      %1364 = vmatprep.subr.mxu0 0.0
      %1365 = vmatpush1.msra.mxu0 0.0
      %1366 = vmatprep.subr.mxu0 0.0
      %1367 = vmatpush1.msra.mxu0 0.0
      %1368 = vmatprep.subr.mxu0 0.0
      %1369 = vmatpush1.msra.mxu0 0.0
      %1370 = vmatprep.subr.mxu0 0.0
      %1371 = vmatpush1.msra.mxu0 0.0
      %1372 = vmatprep.subr.mxu0 0.0
      %1373 = vmatpush1.msra.mxu0 0.0
      %1374 = vmatprep.subr.mxu0 0.0
      %1375 = vmatpush1.msra.mxu0 0.0
      %1376 = vmatprep.subr.mxu0 0.0
      %1377 = vmatpush1.msra.mxu0 0.0
      %1378 = vmatprep.subr.mxu0 0.0
      %1379 = vmatpush1.msra.mxu0 0.0
      %1380 = vmatprep.subr.mxu0 0.0
      %1381 = vmatpush1.msra.mxu0 0.0
      %1382 = vmatprep.subr.mxu0 0.0
      %1383 = vmatpush1.msra.mxu0 0.0
      %1384 = vmatprep.subr.mxu0 0.0
      %1385 = vmatpush1.msra.mxu0 0.0
      %1386 = vmatprep.subr.mxu0 0.0
      %1387 = vmatpush1.msra.mxu0 0.0
      %1388 = vmatprep.subr.mxu0 0.0
      %1389 = vmatpush1.msra.mxu0 0.0
      %1390 = vmatprep.subr.mxu0 0.0
      %1391 = vmatpush1.msra.mxu0 0.0
      %1392 = vmatprep.subr.mxu0 0.0
      %1393 = vmatpush1.msra.mxu0 0.0
      %1394 = vmatprep.subr.mxu0 0.0
      %1395 = vmatpush1.msra.mxu0 0.0
      %1396 = vmatprep.subr.mxu0 0.0
      %1397 = vmatpush1.msra.mxu0 0.0
      %1398 = vmatprep.subr.mxu0 0.0
      %1399 = vmatpush1.msra.mxu0 0.0
      %1400 = vmatprep.subr.mxu0 0.0
      %1401 = vmatpush1.msra.mxu0 0.0
      %1402 = vmatprep.subr.mxu0 0.0
      %1403 = vmatpush1.msra.mxu0 0.0
      %1404 = vmatprep.subr.mxu0 0.0
      %1405 = vmatpush1.msra.mxu0 0.0
      %1406 = vmatprep.subr.mxu0 0.0
      %1407 = vmatpush1.msra.mxu0 0.0
      %1408 = vmatprep.subr.mxu0 0.0
      %1409 = vmatpush1.msra.mxu0 0.0
      %1410 = vmatprep.subr.mxu0 0.0
      %1411 = vmatpush1.msra.mxu0 0.0
      %1412 = vmatprep.subr.mxu0 0.0
      %1413 = vmatpush1.msra.mxu0 0.0
      %1414 = vmatprep.subr.mxu0 0.0
      %1415 = vmatpush1.msra.mxu0 0.0
      %1416 = vmatprep.mubr.f32.mxu0 0.0
      %v1417 = vand.u32 %v646, 4294901760
      %v1418 = vsub.f32 %v646, %v1417
      %v1419 = vand.u32 %v1418, 4294901760
      %1420 = vmatmul.mubr.f32.gmra.mrb[0].mxu0 %v1419
      %v1421 = vpop.f32.mrb[0].mxu0
      %v1422 = vadd.f32 %v1346, %v1421
      %v1423 = vpop.f32.mrb[0].mxu0
      %v1424 = vadd.f32 %v1348, %v1423
      %1425 = vdwg.mxu0
      %v1426 = vand.u32 %v643, 4294901760
      %v1427 = vsub.f32 %v643, %v1426
      %v1428 = vand.u32 %v1427, 4294901760
      %1429 = vmatprep.subr.mxu0 %v1428
      %v1430 = vand.u32 %v642, 4294901760
      %v1431 = vsub.f32 %v642, %v1430
      %v1432 = vand.u32 %v1431, 4294901760
      %1433 = vmatpush1.msra.mxu0 %v1432
      %1434 = vmatprep.subr.mxu0 0.0
      %1435 = vmatpush1.msra.mxu0 0.0
      %1436 = vmatprep.subr.mxu0 0.0
      %1437 = vmatpush1.msra.mxu0 0.0
      %1438 = vmatprep.subr.mxu0 0.0
      %1439 = vmatpush1.msra.mxu0 0.0
      %1440 = vmatprep.subr.mxu0 0.0
      %1441 = vmatpush1.msra.mxu0 0.0
      %1442 = vmatprep.subr.mxu0 0.0
      %1443 = vmatpush1.msra.mxu0 0.0
      %1444 = vmatprep.subr.mxu0 0.0
      %1445 = vmatpush1.msra.mxu0 0.0
      %1446 = vmatprep.subr.mxu0 0.0
      %1447 = vmatpush1.msra.mxu0 0.0
      %1448 = vmatprep.subr.mxu0 0.0
      %1449 = vmatpush1.msra.mxu0 0.0
      %1450 = vmatprep.subr.mxu0 0.0
      %1451 = vmatpush1.msra.mxu0 0.0
      %1452 = vmatprep.subr.mxu0 0.0
      %1453 = vmatpush1.msra.mxu0 0.0
      %1454 = vmatprep.subr.mxu0 0.0
      %1455 = vmatpush1.msra.mxu0 0.0
      %1456 = vmatprep.subr.mxu0 0.0
      %1457 = vmatpush1.msra.mxu0 0.0
      %1458 = vmatprep.subr.mxu0 0.0
      %1459 = vmatpush1.msra.mxu0 0.0
      %1460 = vmatprep.subr.mxu0 0.0
      %1461 = vmatpush1.msra.mxu0 0.0
      %1462 = vmatprep.subr.mxu0 0.0
      %1463 = vmatpush1.msra.mxu0 0.0
      %1464 = vmatprep.subr.mxu0 0.0
      %1465 = vmatpush1.msra.mxu0 0.0
      %1466 = vmatprep.subr.mxu0 0.0
      %1467 = vmatpush1.msra.mxu0 0.0
      %1468 = vmatprep.subr.mxu0 0.0
      %1469 = vmatpush1.msra.mxu0 0.0
      %1470 = vmatprep.subr.mxu0 0.0
      %1471 = vmatpush1.msra.mxu0 0.0
      %1472 = vmatprep.subr.mxu0 0.0
      %1473 = vmatpush1.msra.mxu0 0.0
      %1474 = vmatprep.subr.mxu0 0.0
      %1475 = vmatpush1.msra.mxu0 0.0
      %1476 = vmatprep.subr.mxu0 0.0
      %1477 = vmatpush1.msra.mxu0 0.0
      %1478 = vmatprep.subr.mxu0 0.0
      %1479 = vmatpush1.msra.mxu0 0.0
      %1480 = vmatprep.subr.mxu0 0.0
      %1481 = vmatpush1.msra.mxu0 0.0
      %1482 = vmatprep.subr.mxu0 0.0
      %1483 = vmatpush1.msra.mxu0 0.0
      %1484 = vmatprep.subr.mxu0 0.0
      %1485 = vmatpush1.msra.mxu0 0.0
      %1486 = vmatprep.subr.mxu0 0.0
      %1487 = vmatpush1.msra.mxu0 0.0
      %1488 = vmatprep.subr.mxu0 0.0
      %1489 = vmatpush1.msra.mxu0 0.0
      %1490 = vmatprep.subr.mxu0 0.0
      %1491 = vmatpush1.msra.mxu0 0.0
      %1492 = vmatprep.subr.mxu0 0.0
      %1493 = vmatpush1.msra.mxu0 0.0
      %1494 = vmatprep.subr.mxu0 0.0
      %1495 = vmatpush1.msra.mxu0 0.0
      %1496 = vmatprep.mubr.f32.mxu0 0.0
      %v1497 = vand.u32 %v646, 4294901760
      %1498 = vmatmul.mubr.f32.gmra.mrb[0].mxu0 %v1497
      %v1499 = vpop.f32.mrb[0].mxu0
      %v1500 = vadd.f32 %v1422, %v1499
      %v1501 = vpop.f32.mrb[0].mxu0
      %v1502 = vadd.f32 %v1424, %v1501
      %1503 = vdwg.mxu0
      %v1504 = vand.u32 %v643, 4294901760
      %1505 = vmatprep.subr.mxu0 %v1504
      %v1506 = vand.u32 %v642, 4294901760
      %1507 = vmatpush1.msra.mxu0 %v1506
      %1508 = vmatprep.subr.mxu0 0.0
      %1509 = vmatpush1.msra.mxu0 0.0
      %1510 = vmatprep.subr.mxu0 0.0
      %1511 = vmatpush1.msra.mxu0 0.0
      %1512 = vmatprep.subr.mxu0 0.0
      %1513 = vmatpush1.msra.mxu0 0.0
      %1514 = vmatprep.subr.mxu0 0.0
      %1515 = vmatpush1.msra.mxu0 0.0
      %1516 = vmatprep.subr.mxu0 0.0
      %1517 = vmatpush1.msra.mxu0 0.0
      %1518 = vmatprep.subr.mxu0 0.0
      %1519 = vmatpush1.msra.mxu0 0.0
      %1520 = vmatprep.subr.mxu0 0.0
      %1521 = vmatpush1.msra.mxu0 0.0
      %1522 = vmatprep.subr.mxu0 0.0
      %1523 = vmatpush1.msra.mxu0 0.0
      %1524 = vmatprep.subr.mxu0 0.0
      %1525 = vmatpush1.msra.mxu0 0.0
      %1526 = vmatprep.subr.mxu0 0.0
      %1527 = vmatpush1.msra.mxu0 0.0
      %1528 = vmatprep.subr.mxu0 0.0
      %1529 = vmatpush1.msra.mxu0 0.0
      %1530 = vmatprep.subr.mxu0 0.0
      %1531 = vmatpush1.msra.mxu0 0.0
      %1532 = vmatprep.subr.mxu0 0.0
      %1533 = vmatpush1.msra.mxu0 0.0
      %1534 = vmatprep.subr.mxu0 0.0
      %1535 = vmatpush1.msra.mxu0 0.0
      %1536 = vmatprep.subr.mxu0 0.0
      %1537 = vmatpush1.msra.mxu0 0.0
      %1538 = vmatprep.subr.mxu0 0.0
      %1539 = vmatpush1.msra.mxu0 0.0
      %1540 = vmatprep.subr.mxu0 0.0
      %1541 = vmatpush1.msra.mxu0 0.0
      %1542 = vmatprep.subr.mxu0 0.0
      %1543 = vmatpush1.msra.mxu0 0.0
      %1544 = vmatprep.subr.mxu0 0.0
      %1545 = vmatpush1.msra.mxu0 0.0
      %1546 = vmatprep.subr.mxu0 0.0
      %1547 = vmatpush1.msra.mxu0 0.0
      %1548 = vmatprep.subr.mxu0 0.0
      %1549 = vmatpush1.msra.mxu0 0.0
      %1550 = vmatprep.subr.mxu0 0.0
      %1551 = vmatpush1.msra.mxu0 0.0
      %1552 = vmatprep.subr.mxu0 0.0
      %1553 = vmatpush1.msra.mxu0 0.0
      %1554 = vmatprep.subr.mxu0 0.0
      %1555 = vmatpush1.msra.mxu0 0.0
      %1556 = vmatprep.subr.mxu0 0.0
      %1557 = vmatpush1.msra.mxu0 0.0
      %1558 = vmatprep.subr.mxu0 0.0
      %1559 = vmatpush1.msra.mxu0 0.0
      %1560 = vmatprep.subr.mxu0 0.0
      %1561 = vmatpush1.msra.mxu0 0.0
      %1562 = vmatprep.subr.mxu0 0.0
      %1563 = vmatpush1.msra.mxu0 0.0
      %1564 = vmatprep.subr.mxu0 0.0
      %1565 = vmatpush1.msra.mxu0 0.0
      %1566 = vmatprep.subr.mxu0 0.0
      %1567 = vmatpush1.msra.mxu0 0.0
      %1568 = vmatprep.subr.mxu0 0.0
      %1569 = vmatpush1.msra.mxu0 0.0
      %1570 = vmatprep.mubr.f32.mxu0 0.0
      %v1571 = vand.u32 %v646, 4294901760
      %1572 = vmatmul.mubr.f32.gmra.mrb[0].mxu0 %v1571
      %v1573 = vpop.f32.mrb[0].mxu0
      %v1574 = vadd.f32 %v1500, %v1573
      %v1575 = vpop.f32.mrb[0].mxu0
      %v1576 = vadd.f32 %v1502, %v1575
      %1577 = vdwg.mxu0
      %v1578 = vsub.f32 %v1109, %v383
      %v1579 = vsub.f32 %v1111, %v384
      %v1580 = vsub.f32 %v1574, %v385
      %v1581 = vsub.f32 %v1576, %v386
      %v1586 = vrot.slane %v383, 4
      %v1587 = vrot.slane %v384, 4
      %v1588 = vrot.slane %v385, 4
      %v1589 = vrot.slane %v386, 4
      %v1594 = vmul.f32 %v1578, %v1586
      %v1595 = vmul.f32 %v1579, %v1587
      %v1596 = vmul.f32 %v1580, %v1588
      %v1597 = vmul.f32 %v1581, %v1589
      %vm1598 = vcmp.ge.s32.totalorder %v583, 2
      %v1599 = vmax.f32 %v1594, 1e-20
      %v1600 = vmax.f32 %v1595, 1e-20
      %v1601 = vmax.f32 %v1596, 1e-20
      %v1602 = vmax.f32 %v1597, 1e-20
      %v1603 = vsel %vm1598, %v1599, 1.0
      %v1604 = vsel %vm1598, %v1600, 1.0
      %v1605 = vsel %vm1598, %v1601, 1.0
      %v1606 = vsel %vm1598, %v1602, 1.0
      %v1607 = vlog2.pop %v1603
      %v1608 = vmul.f32 %v1607, 0.6931472
      %v1609 = vlog2.pop %v1604
      %v1610 = vmul.f32 %v1609, 0.6931472
      %v1611 = vlog2.pop %v1605
      %v1612 = vmul.f32 %v1611, 0.6931472
      %v1613 = vlog2.pop %v1606
      %v1614 = vmul.f32 %v1613, 0.6931472
      %v1615 = vsel %vm1598, %v1608, %v1594
      %v1616 = vsel %vm1598, %v1610, %v1595
      %v1617 = vsel %vm1598, %v1612, %v1596
      %v1618 = vsel %vm1598, %v1614, %v1597
      %v1621 = vcombine.high %v387, %v387
      %v1622 = vcombine.high %v388, %v388
      %v1625 = vsub.f32 %v1615, %v387
      %v1626 = vsub.f32 %v1616, %v1621
      %v1627 = vsub.f32 %v1617, %v388
      %v1628 = vsub.f32 %v1618, %v1622
      %v1629 = vand.u32 2147483647, %v1625
      %v1630 = vand.u32 2147483647, %v1626
      %v1631 = vand.u32 2147483647, %v1627
      %v1632 = vand.u32 2147483647, %v1628
      %vm1633 = vcmp.le.f32.partialorder %v1629, 0.11111111
      %vm1634 = vcmp.le.f32.partialorder %v1630, 0.11111111
      %vm1635 = vcmp.le.f32.partialorder %v1631, 0.11111111
      %vm1636 = vcmp.le.f32.partialorder %v1632, 0.11111111
      %v1637 = vmul.f32 %v1629, 4.5
      %v1638 = vmul.f32 %v1630, 4.5
      %v1639 = vmul.f32 %v1631, 4.5
      %v1640 = vmul.f32 %v1632, 4.5
      %v1641 = vmul.f32 %v1637, %v1629
      %v1642 = vmul.f32 %v1638, %v1630
      %v1643 = vmul.f32 %v1639, %v1631
      %v1644 = vmul.f32 %v1640, %v1632
      %v1645 = vsub.f32 %v1629, 0.055555556
      %v1646 = vsub.f32 %v1630, 0.055555556
      %v1647 = vsub.f32 %v1631, 0.055555556
      %v1648 = vsub.f32 %v1632, 0.055555556
      %v1649 = vsel %vm1633, %v1641, %v1645
      %v1650 = vsel %vm1634, %v1642, %v1646
      %v1651 = vsel %vm1635, %v1643, %v1647
      %v1652 = vsel %vm1636, %v1644, %v1648
      %v1653 = vsel %vm628, 1, 0
      %v1654 = vsel %vm629, 1, 0
      %v1655 = vsel %vm630, 1, 0
      %v1656 = vsel %vm631, 1, 0
      %vm1657 = vcmp.eq.s32.totalorder %v1653, 1
      %vm1658 = vcmp.eq.s32.totalorder %v1654, 1
      %vm1659 = vcmp.eq.s32.totalorder %v1655, 1
      %vm1660 = vcmp.eq.s32.totalorder %v1656, 1
      %v1661 = vsel %vm1657, %v1649, 0.0
      %v1662 = vsel %vm1658, %v1650, 0.0
      %v1663 = vsel %vm1659, %v1651, 0.0
      %v1664 = vsel %vm1660, %v1652, 0.0
      %v1665 = vadd.f32 %v1661, 0.0
      %v1666 = vadd.f32 %v1662, 0.0
      %v1667 = vadd.f32 %v1663, 0.0
      %v1668 = vadd.f32 %v1664, 0.0
      %v1669 = vcvt.s32.f32 %v1653
      %v1670 = vcvt.s32.f32 %v1654
      %v1671 = vcvt.s32.f32 %v1655
      %v1672 = vcvt.s32.f32 %v1656
      %v1673 = vadd.f32 %v1669, 0.0
      %v1674 = vadd.f32 %v1670, 0.0
      %v1675 = vadd.f32 %v1671, 0.0
      %v1676 = vadd.f32 %v1672, 0.0
      %v1677 = vld [vmem:[%s368] sm:$0xf]
      %v1678 = vld [vmem:[%s368 + $0x8] sm:$0xf]
      %v1679 = vld [vmem:[%s368 + $0x10] sm:$0xf]
      %v1680 = vld [vmem:[%s368 + $0x18] sm:$0xf]
      %v1681 = vadd.f32 %v1677, %v1665
      %v1682 = vadd.f32 %v1678, %v1666
      %v1683 = vadd.f32 %v1679, %v1667
      %v1684 = vadd.f32 %v1680, %v1668
      %1685 = vst [vmem:[%s368] sm:$0xf] %v1681
      %1686 = vst [vmem:[%s368 + $0x8] sm:$0xf] %v1682
      %1687 = vst [vmem:[%s368 + $0x10] sm:$0xf] %v1683
      %1688 = vst [vmem:[%s368 + $0x18] sm:$0xf] %v1684
      %s1689 = scalar_lea.vmem %s368, 4
      %v1690 = vld [vmem:[%s1689] ss:$8 sm:$0xf]
      %v1695 = vcombine.low %v1673, %v1674
      %v1696 = vcombine.low %v1675, %v1676
      %v1698 = vunpack.c.l.s4 1966171168
      %v1699 = vunpack.c.0.s8 %v1698
      %v1700 = vlaneseq
      %v1701 = vshrl.u32 %v1700, 7
      %v1702 = vsub.s32 %v1699, %v1701
      %v1703 = vrot.slane %v1695, %v1702
      %v1705 = vunpack.c.l.s4 1966171168
      %v1706 = vunpack.c.0.s8 %v1705
      %v1707 = vlaneseq
      %v1708 = vshrl.u32 %v1707, 7
      %v1709 = vsub.s32 %v1706, %v1708
      %v1710 = vrot.slane %v1696, %v1709
      %v1711 = vcombine.low %v1703, %v1710
      %v1713 = vunpack.c.l.s4 1966171168
      %v1714 = vunpack.c.0.s8 %v1713
      %v1715 = vlaneseq
      %v1716 = vshrl.u32 %v1715, 7
      %v1717 = vsub.s32 %v1714, %v1716
      %v1718 = vrot.slane %v1711, %v1717
      %v1720 = vadd.f32 %v1690, %v1718
      %v1721 = vlaneseq
      %vm1722 = vcmp.ge.s32.totalorder %v1721, 0
      %vm1723 = vcmp.lt.s32.totalorder %v1721, 512
      %vm1724 = vmand %vm1722, %vm1723
      %1725 = vst.msk [vmem:[%s1689] ss:$8 sm:$0xf] %vm1724, %v1720
      %1726 = vst.msk [vmem:[%s1689] ss:$8 sm:$0x0] %vm1724, %v1720
      %p1727 = scmp.lt.s32.totalorder %s21, 1
      %s1728 = scalar_select %p1727, %s21, 1
      %p1729 = scmp.lt.s32.totalorder %s22, 0
      %s1730 = scalar_select %p1729, %s22, 0
      %s1731 = smul.addr %s1730, 4
      %s1732 = smul.addr %s1728, 4
      %s1733 = sadd.s32 %s1731, %s1732
      %s1734 = smul.addr %s1733, 8
      %s1735 = scalar_lea.vmem %s5, %s1734
      // Predicated region
      $region45: #{focal_loss_reg.1} parent=39 // pred_check
        %p1736 = pneg %p193
      $region46: #{focal_loss_reg.1} parent=39 // pred_check_branch
        %1738 = sbr.rel (%p1736) target = $region48
      $region47: #{focal_loss_reg.1} parent=39 // pred_region
        _
      $region48: #{focal_loss_reg.1} parent=39 // pred_fallthru
        _
    $region40: #{focal_loss_reg.1} parent=5 // pred_fallthru
      _
    %p1739 = scmp.le.s32.totalorder 2, %s11
    // Predicated region
    $region49: #{focal_loss_reg.1} parent=5 // pred_check
      %p1740 = pneg %p1739
    $region50: #{focal_loss_reg.1} parent=5 // pred_check_branch
      %1742 = sbr.rel (%p1740) target = $region52
    $region51: #{focal_loss_reg.1} parent=5 // pred_region
      %s1743 = ssub.s32 %s11, 2
      // Predicated region
      $region53: #{focal_loss_reg.1} parent=51 // pred_check
        %p1744 = pneg %p199
      $region54: #{focal_loss_reg.1} parent=51 // pred_check_branch
        %1746 = sbr.rel (%p1744) target = $region56
      $region55: #{focal_loss_reg.1} parent=51 // pred_region
        %p1747 = scmp.lt.s32.totalorder %s24, 1
        %s1748 = scalar_select %p1747, %s24, 1
        %p1749 = scmp.lt.s32.totalorder %s25, 0
        %s1750 = scalar_select %p1749, %s25, 0
        %s1751 = smul.addr %s1750, 4
        %s1752 = smul.addr %s1748, 4
        %s1753 = sadd.s32 %s1751, %s1752
        %s1754 = smul.addr %s1753, 8
        %s1755 = scalar_lea.vmem %s5, %s1754
      $region56: #{focal_loss_reg.1} parent=51 // pred_fallthru
        _
    $region52: #{focal_loss_reg.1} parent=5 // pred_fallthru
      _
  $region6: #{focal_loss_reg.1} parent=0 // loop_footer
    %s15 = sadd.s32 1, %s11
  $region7: #{focal_loss_reg.1} parent=0 // loop_footer_branch
    %10 = sbr.rel target = $region3
  $region8: #{focal_loss_reg.1} parent=0 // loop_exit
    _

</llo_original>
